<compile_context>
chip_gen: v5e
topology: v5e:2x2
jax: 0.10.0
libtpu: 0.0.40
codegen_flags: <defaults>
</compile_context>

<pallas_src>
from functools import partial

import jax
import jax.numpy as jnp
from jax import lax
from jax.experimental import pallas as pl
from jax.experimental.pallas import tpu as pltpu


@partial(jax.jit, static_argnames=("num_classes",))
def morph_lstm_forward(x_idx, params, num_classes):
    """x_idx: (B, K) int -> logits (B, K, C, P) float32."""
    B, K = x_idx.shape
    V, E = params["embedding"].shape
    H = params["whh_f"].shape[0]
    G = 4 * H                                   # gate width per direction
    CP = params["morph_w"].shape[1]             # C * P packed head columns
    C = num_classes
    P = CP // C

    Bp = ((B + 7) // 8) * 8                     # pad batch to a full f32 sublane tile
    KBp = K * Bp
    OUT_LANES = ((CP + 127) // 128) * 128       # lane-dense output width (>= 128)

    # ---- parameter packing (cheap; fused into the same jit) ----
    wih_cat = jnp.concatenate([params["wih_f"], params["wih_b"]], axis=1)     # (E, 8H)
    b_cat = jnp.concatenate([params["b_f"], params["b_b"]])[None, :]          # (1, 8H)
    mw_pad = jnp.zeros((2 * H, OUT_LANES), jnp.float32).at[:, :CP].set(params["morph_w"])
    mb_pad = jnp.zeros((1, OUT_LANES), jnp.float32).at[0, :CP].set(params["morph_b"])

    # indices: pad batch, go time-major, flatten so that row = t * Bp + b
    idx_pad = jnp.zeros((Bp, K), jnp.int32).at[:B].set(x_idx.astype(jnp.int32))
    idx_flat = jnp.transpose(idx_pad).reshape(KBp, 1)

    table = params["embedding"].astype(jnp.float32)
    whh_f = params["whh_f"]
    whh_b = params["whh_b"]

    def kernel(idx_ref, tab_ref, wih_ref, b_ref, whh_f_ref, whh_b_ref,
               mw_ref, mb_ref, out_ref, pg, hf_scr, hb_scr):
        # -- fused embedding gather (one-hot matmul) + ReLU --
        idx = idx_ref[...]                                            # (KBp, 1) int32
        vocab = lax.broadcasted_iota(jnp.int32, (KBp, V), 1)
        onehot = (vocab == idx).astype(jnp.float32)                   # (KBp, V)
        x = jnp.maximum(
            jnp.dot(onehot, tab_ref[...], preferred_element_type=jnp.float32), 0.0)

        # -- time-independent input projection, both directions in ONE matmul --
        pg[...] = (jnp.dot(x, wih_ref[...], preferred_element_type=jnp.float32)
                   + b_ref[...])                                      # (KBp, 8H)

        # -- recurrent weights resident in vregs across the whole recurrence --
        w_f = whh_f_ref[...]
        w_b = whh_b_ref[...]

        h_f = jnp.zeros((Bp, H), jnp.float32)
        c_f = jnp.zeros((Bp, H), jnp.float32)
        h_b = jnp.zeros((Bp, H), jnp.float32)
        c_b = jnp.zeros((Bp, H), jnp.float32)

        def cell(pre, h_prev, c_prev, whh):
            gates = pre + jnp.dot(h_prev, whh, preferred_element_type=jnp.float32)
            # Full-vreg nonlinearities: gates is exactly (8,128). Sigmoid is
            # expressed exactly as 0.5*(1+tanh(z/2)) to route to the EUP and
            # avoid a VPU divide; gate order i,f,g,o along the 4H lanes.
            sig = 0.5 * (jnp.tanh(0.5 * gates) + 1.0)
            th = jnp.tanh(gates)
            c_new = sig[:, H:2 * H] * c_prev + sig[:, 0:H] * th[:, 2 * H:3 * H]
            h_new = sig[:, 3 * H:4 * H] * jnp.tanh(c_new)
            return h_new, c_new

        # -- single fully-unrolled loop advancing both directions per step --
        for t in range(K):
            tb = K - 1 - t
            pre_f = pg[t * Bp:(t + 1) * Bp, 0:G]
            pre_b = pg[tb * Bp:(tb + 1) * Bp, G:2 * G]
            h_f, c_f = cell(pre_f, h_f, c_f, w_f)
            h_b, c_b = cell(pre_b, h_b, c_b, w_b)
            hf_scr[t * Bp:(t + 1) * Bp, :] = h_f
            hb_scr[tb * Bp:(tb + 1) * Bp, :] = h_b

        # -- fused morphology heads: ReLU + one lane-dense matmul + one store --
        xf = jnp.maximum(hf_scr[...], 0.0)                            # (KBp, H)
        xb = jnp.maximum(hb_scr[...], 0.0)
        out_ref[...] = (jnp.dot(xf, mw_ref[0:H, :], preferred_element_type=jnp.float32)
                        + jnp.dot(xb, mw_ref[H:2 * H, :], preferred_element_type=jnp.float32)
                        + mb_ref[...])

    out = pl.pallas_call(
        kernel,
        out_shape=jax.ShapeDtypeStruct((KBp, OUT_LANES), jnp.float32),
        in_specs=[pl.BlockSpec(memory_space=pltpu.MemorySpace.VMEM)] * 8,
        out_specs=pl.BlockSpec(memory_space=pltpu.MemorySpace.VMEM),
        scratch_shapes=[
            pltpu.VMEM((KBp, 2 * G), jnp.float32),   # hoisted pre-gates, both dirs
            pltpu.VMEM((KBp, H), jnp.float32),       # all forward hidden states
            pltpu.VMEM((KBp, H), jnp.float32),       # all backward hidden states
        ],
    )(idx_flat, table, wih_cat, b_cat, whh_f, whh_b, mw_pad, mb_pad)

    logits = out[:, :CP].reshape(K, Bp, C, P)
    # back to PyTorch layout (B, K, C, P) == torch.stack(logit_list, dim=2)
    return jnp.transpose(logits, (1, 0, 2, 3))[:B]


def reference_forward(x_idx, params, num_classes):
    """Pure-JAX reference of the PyTorch forward (for correctness check)."""
    emb = params["embedding"][x_idx].astype(jnp.float32)     # (B, K, E)
    B, K, _ = emb.shape
    H = params["whh_f"].shape[0]
    e = jnp.maximum(emb, 0.0)

    def run_dir(seq, wih, whh, b):
        def step(carry, x_t):
            h, c = carry
            gates = x_t @ wih + h @ whh + b
            i_g = jax.nn.sigmoid(gates[:, 0 * H:1 * H])
            f_g = jax.nn.sigmoid(gates[:, 1 * H:2 * H])
            g_g = jnp.tanh(gates[:, 2 * H:3 * H])
            o_g = jax.nn.sigmoid(gates[:, 3 * H:4 * H])
            c = f_g * c + i_g * g_g
            h = o_g * jnp.tanh(c)
            return (h, c), h
        init = (jnp.zeros((B, H), jnp.float32), jnp.zeros((B, H), jnp.float32))
        _, hs = lax.scan(step, init, jnp.swapaxes(seq, 0, 1))
        return jnp.swapaxes(hs, 0, 1)                         # (B, K, H)

    hf = run_dir(e, params["wih_f"], params["whh_f"], params["b_f"])
    hb = run_dir(e[:, ::-1, :], params["wih_b"], params["whh_b"],
                 params["b_b"])[:, ::-1, :]
    x = jnp.maximum(jnp.concatenate([hf, hb], axis=-1), 0.0)  # (B, K, 2H)
    logits = x @ params["morph_w"] + params["morph_b"]        # (B, K, C*P)
    return logits.reshape(B, K, num_classes, -1)


if __name__ == "__main__":
    # Small shapes consistent with the module's forward.
    B, K = 2, 8
    V, E, H = 50, 32, 32               # num_words, embedding_size, lstm_hidd_size_1
    num_c_possibility = [4, 5, 6]
    C = len(num_c_possibility)          # num_classes
    P = max(num_c_possibility)          # add_zero=False -> every head outputs P logits

    key = jax.random.PRNGKey(0)
    ks = jax.random.split(key, 10)
    s_lstm = float(1.0 / jnp.sqrt(H))
    s_fc = float(1.0 / jnp.sqrt(2 * H))
    params = {
        "embedding": jax.random.normal(ks[0], (V, E), jnp.float32),
        # LSTM weights stored right-multiply (in, 4H), gate order i,f,g,o; the
        # two PyTorch biases (b_ih + b_hh) are folded into one bias per direction.
        "wih_f": jax.random.uniform(ks[1], (E, 4 * H), jnp.float32, -s_lstm, s_lstm),
        "whh_f": jax.random.uniform(ks[2], (H, 4 * H), jnp.float32, -s_lstm, s_lstm),
        "b_f": jax.random.uniform(ks[3], (4 * H,), jnp.float32, -s_lstm, s_lstm),
        "wih_b": jax.random.uniform(ks[4], (E, 4 * H), jnp.float32, -s_lstm, s_lstm),
        "whh_b": jax.random.uniform(ks[5], (H, 4 * H), jnp.float32, -s_lstm, s_lstm),
        "b_b": jax.random.uniform(ks[6], (4 * H,), jnp.float32, -s_lstm, s_lstm),
        # C morph heads packed column-wise: head c occupies columns [c*P, (c+1)*P)
        "morph_w": jax.random.uniform(ks[7], (2 * H, C * P), jnp.float32, -s_fc, s_fc),
        "morph_b": jax.random.uniform(ks[8], (C * P,), jnp.float32, -s_fc, s_fc),
    }

    x_idx = jax.random.randint(ks[9], (B, K), 0, V, dtype=jnp.int32)

    logits = morph_lstm_forward(x_idx, params, num_classes=C)
    logits = jax.block_until_ready(logits)

    ref = reference_forward(x_idx, params, C)
    assert logits.shape == (B, K, C, P), logits.shape
    max_err = float(jnp.max(jnp.abs(logits - ref)))
    assert jnp.allclose(logits, ref, rtol=5e-3, atol=5e-3), max_err
    print("KERNEL_OK")
</pallas_src>

<mosaic_0001>
module attributes {stable_mosaic.version = 11 : i64} {
  func.func @kernel(%arg0: memref<64x1xi32, #tpu.memory_space<vmem>>, %arg1: memref<50x32xf32, #tpu.memory_space<vmem>>, %arg2: memref<32x256xf32, #tpu.memory_space<vmem>>, %arg3: memref<1x256xf32, #tpu.memory_space<vmem>>, %arg4: memref<32x128xf32, #tpu.memory_space<vmem>>, %arg5: memref<32x128xf32, #tpu.memory_space<vmem>>, %arg6: memref<64x128xf32, #tpu.memory_space<vmem>>, %arg7: memref<1x128xf32, #tpu.memory_space<vmem>>, %arg8: memref<64x128xf32, #tpu.memory_space<vmem>>, %arg9: memref<64x256xf32, #tpu.memory_space<vmem>>, %arg10: memref<64x32xf32, #tpu.memory_space<vmem>>, %arg11: memref<64x32xf32, #tpu.memory_space<vmem>>) attributes {dimension_semantics = [], scalar_prefetch = 0 : i64, scratch_operands = 3 : i64, tpu.core_type = #tpu.core_type<tc>} {
    %c0 = arith.constant 0 : index
    %c0_0 = arith.constant 0 : index
    %0 = vector.load %arg0[%c0, %c0_0] : memref<64x1xi32, #tpu.memory_space<vmem>>, vector<64x1xi32>
    %1 = tpu.iota {dimensions = array<i32: 1>} : vector<64x50xi32>
    %2 = vector.broadcast %0 : vector<64x1xi32> to vector<64x50xi32>
    %3 = arith.cmpi eq, %1, %2 : vector<64x50xi32>
    %4 = arith.extui %3 : vector<64x50xi1> to vector<64x50xi32>
    %5 = arith.sitofp %4 : vector<64x50xi32> to vector<64x50xf32>
    %c0_1 = arith.constant 0 : index
    %c0_2 = arith.constant 0 : index
    %6 = vector.load %arg1[%c0_1, %c0_2] : memref<50x32xf32, #tpu.memory_space<vmem>>, vector<50x32xf32>
    %cst = arith.constant dense<0.000000e+00> : vector<64x32xf32>
    %7 = tpu.matmul %5, %6, %cst {dimension_numbers = #tpu.dot_dimension_numbers<[1], [0], [0], [1], [0, 0, 1, 1], [], []>} : vector<64x50xf32>, vector<50x32xf32>, vector<64x32xf32> -> vector<64x32xf32>
    %cst_3 = arith.constant 0.000000e+00 : f32
    %8 = vector.broadcast %cst_3 : f32 to vector<64x32xf32>
    %9 = arith.maximumf %7, %8 : vector<64x32xf32>
    %c0_4 = arith.constant 0 : index
    %c0_5 = arith.constant 0 : index
    %10 = vector.load %arg2[%c0_4, %c0_5] : memref<32x256xf32, #tpu.memory_space<vmem>>, vector<32x256xf32>
    %cst_6 = arith.constant dense<0.000000e+00> : vector<64x256xf32>
    %11 = tpu.matmul %9, %10, %cst_6 {dimension_numbers = #tpu.dot_dimension_numbers<[1], [0], [0], [1], [0, 0, 1, 1], [], []>} : vector<64x32xf32>, vector<32x256xf32>, vector<64x256xf32> -> vector<64x256xf32>
    %c0_7 = arith.constant 0 : index
    %c0_8 = arith.constant 0 : index
    %12 = vector.load %arg3[%c0_7, %c0_8] : memref<1x256xf32, #tpu.memory_space<vmem>>, vector<1x256xf32>
    %13 = vector.broadcast %12 : vector<1x256xf32> to vector<64x256xf32>
    %14 = arith.addf %11, %13 : vector<64x256xf32>
    %c0_9 = arith.constant 0 : index
    %c0_10 = arith.constant 0 : index
    %15 = vector.load %arg9[%c0_9, %c0_10] : memref<64x256xf32, #tpu.memory_space<vmem>>, vector<64x256xf32>
    tpu.vector_store %arg9[%c0_9, %c0_10], %14 {strides = array<i32>} : memref<64x256xf32, #tpu.memory_space<vmem>>, vector<64x256xf32>,
    %c0_11 = arith.constant 0 : index
    %c0_12 = arith.constant 0 : index
    %16 = vector.load %arg4[%c0_11, %c0_12] : memref<32x128xf32, #tpu.memory_space<vmem>>, vector<32x128xf32>
    %c0_13 = arith.constant 0 : index
    %c0_14 = arith.constant 0 : index
    %17 = vector.load %arg5[%c0_13, %c0_14] : memref<32x128xf32, #tpu.memory_space<vmem>>, vector<32x128xf32>
    %cst_15 = arith.constant 0.000000e+00 : f32
    %18 = vector.broadcast %cst_15 : f32 to vector<8x32xf32>
    %cst_16 = arith.constant 0.000000e+00 : f32
    %19 = vector.broadcast %cst_16 : f32 to vector<8x32xf32>
    %cst_17 = arith.constant 0.000000e+00 : f32
    %20 = vector.broadcast %cst_17 : f32 to vector<8x32xf32>
    %cst_18 = arith.constant 0.000000e+00 : f32
    %21 = vector.broadcast %cst_18 : f32 to vector<8x32xf32>
    %c0_19 = arith.constant 0 : index
    %c0_20 = arith.constant 0 : index
    %22 = vector.load %arg9[%c0_19, %c0_20] : memref<64x256xf32, #tpu.memory_space<vmem>>, vector<8x128xf32>
    %c56 = arith.constant 56 : index
    %c128 = arith.constant 128 : index
    %23 = vector.load %arg9[%c56, %c128] : memref<64x256xf32, #tpu.memory_space<vmem>>, vector<8x128xf32>
    %cst_21 = arith.constant dense<0.000000e+00> : vector<8x128xf32>
    %24 = tpu.matmul %18, %16, %cst_21 {dimension_numbers = #tpu.dot_dimension_numbers<[1], [0], [0], [1], [0, 0, 1, 1], [], []>} : vector<8x32xf32>, vector<32x128xf32>, vector<8x128xf32> -> vector<8x128xf32>
    %25 = arith.addf %22, %24 : vector<8x128xf32>
    %cst_22 = arith.constant 5.000000e-01 : f32
    %26 = vector.broadcast %cst_22 : f32 to vector<8x128xf32>
    %27 = arith.mulf %26, %25 : vector<8x128xf32>
    %28 = math.tanh %27 : vector<8x128xf32>
    %cst_23 = arith.constant 1.000000e+00 : f32
    %29 = vector.broadcast %cst_23 : f32 to vector<8x128xf32>
    %30 = arith.addf %28, %29 : vector<8x128xf32>
    %cst_24 = arith.constant 5.000000e-01 : f32
    %31 = vector.broadcast %cst_24 : f32 to vector<8x128xf32>
    %32 = arith.mulf %31, %30 : vector<8x128xf32>
    %33 = math.tanh %25 : vector<8x128xf32>
    %34 = vector.extract_strided_slice %32 {offsets = [0, 32], sizes = [8, 32], strides = [1, 1]} : vector<8x128xf32> to vector<8x32xf32>
    %35 = arith.mulf %34, %19 : vector<8x32xf32>
    %36 = vector.extract_strided_slice %32 {offsets = [0, 0], sizes = [8, 32], strides = [1, 1]} : vector<8x128xf32> to vector<8x32xf32>
    %37 = vector.extract_strided_slice %33 {offsets = [0, 64], sizes = [8, 32], strides = [1, 1]} : vector<8x128xf32> to vector<8x32xf32>
    %38 = arith.mulf %36, %37 : vector<8x32xf32>
    %39 = arith.addf %35, %38 : vector<8x32xf32>
    %40 = vector.extract_strided_slice %32 {offsets = [0, 96], sizes = [8, 32], strides = [1, 1]} : vector<8x128xf32> to vector<8x32xf32>
    %41 = math.tanh %39 : vector<8x32xf32>
    %42 = arith.mulf %40, %41 : vector<8x32xf32>
    %cst_25 = arith.constant dense<0.000000e+00> : vector<8x128xf32>
    %43 = tpu.matmul %20, %17, %cst_25 {dimension_numbers = #tpu.dot_dimension_numbers<[1], [0], [0], [1], [0, 0, 1, 1], [], []>} : vector<8x32xf32>, vector<32x128xf32>, vector<8x128xf32> -> vector<8x128xf32>
    %44 = arith.addf %23, %43 : vector<8x128xf32>
    %cst_26 = arith.constant 5.000000e-01 : f32
    %45 = vector.broadcast %cst_26 : f32 to vector<8x128xf32>
    %46 = arith.mulf %45, %44 : vector<8x128xf32>
    %47 = math.tanh %46 : vector<8x128xf32>
    %cst_27 = arith.constant 1.000000e+00 : f32
    %48 = vector.broadcast %cst_27 : f32 to vector<8x128xf32>
    %49 = arith.addf %47, %48 : vector<8x128xf32>
    %cst_28 = arith.constant 5.000000e-01 : f32
    %50 = vector.broadcast %cst_28 : f32 to vector<8x128xf32>
    %51 = arith.mulf %50, %49 : vector<8x128xf32>
    %52 = math.tanh %44 : vector<8x128xf32>
    %53 = vector.extract_strided_slice %51 {offsets = [0, 32], sizes = [8, 32], strides = [1, 1]} : vector<8x128xf32> to vector<8x32xf32>
    %54 = arith.mulf %53, %21 : vector<8x32xf32>
    %55 = vector.extract_strided_slice %51 {offsets = [0, 0], sizes = [8, 32], strides = [1, 1]} : vector<8x128xf32> to vector<8x32xf32>
    %56 = vector.extract_strided_slice %52 {offsets = [0, 64], sizes = [8, 32], strides = [1, 1]} : vector<8x128xf32> to vector<8x32xf32>
    %57 = arith.mulf %55, %56 : vector<8x32xf32>
    %58 = arith.addf %54, %57 : vector<8x32xf32>
    %59 = vector.extract_strided_slice %51 {offsets = [0, 96], sizes = [8, 32], strides = [1, 1]} : vector<8x128xf32> to vector<8x32xf32>
    %60 = math.tanh %58 : vector<8x32xf32>
    %61 = arith.mulf %59, %60 : vector<8x32xf32>
    %c0_29 = arith.constant 0 : index
    %c0_30 = arith.constant 0 : index
    %62 = vector.load %arg10[%c0_29, %c0_30] : memref<64x32xf32, #tpu.memory_space<vmem>>, vector<8x32xf32>
    tpu.vector_store %arg10[%c0_29, %c0_30], %42 {strides = array<i32>} : memref<64x32xf32, #tpu.memory_space<vmem>>, vector<8x32xf32>,
    %c56_31 = arith.constant 56 : index
    %c0_32 = arith.constant 0 : index
    %63 = vector.load %arg11[%c56_31, %c0_32] : memref<64x32xf32, #tpu.memory_space<vmem>>, vector<8x32xf32>
    tpu.vector_store %arg11[%c56_31, %c0_32], %61 {strides = array<i32>} : memref<64x32xf32, #tpu.memory_space<vmem>>, vector<8x32xf32>,
    %c8 = arith.constant 8 : index
    %c0_33 = arith.constant 0 : index
    %64 = vector.load %arg9[%c8, %c0_33] : memref<64x256xf32, #tpu.memory_space<vmem>>, vector<8x128xf32>
    %c48 = arith.constant 48 : index
    %c128_34 = arith.constant 128 : index
    %65 = vector.load %arg9[%c48, %c128_34] : memref<64x256xf32, #tpu.memory_space<vmem>>, vector<8x128xf32>
    %cst_35 = arith.constant dense<0.000000e+00> : vector<8x128xf32>
    %66 = tpu.matmul %42, %16, %cst_35 {dimension_numbers = #tpu.dot_dimension_numbers<[1], [0], [0], [1], [0, 0, 1, 1], [], []>} : vector<8x32xf32>, vector<32x128xf32>, vector<8x128xf32> -> vector<8x128xf32>
    %67 = arith.addf %64, %66 : vector<8x128xf32>
    %cst_36 = arith.constant 5.000000e-01 : f32
    %68 = vector.broadcast %cst_36 : f32 to vector<8x128xf32>
    %69 = arith.mulf %68, %67 : vector<8x128xf32>
    %70 = math.tanh %69 : vector<8x128xf32>
    %cst_37 = arith.constant 1.000000e+00 : f32
    %71 = vector.broadcast %cst_37 : f32 to vector<8x128xf32>
    %72 = arith.addf %70, %71 : vector<8x128xf32>
    %cst_38 = arith.constant 5.000000e-01 : f32
    %73 = vector.broadcast %cst_38 : f32 to vector<8x128xf32>
    %74 = arith.mulf %73, %72 : vector<8x128xf32>
    %75 = math.tanh %67 : vector<8x128xf32>
    %76 = vector.extract_strided_slice %74 {offsets = [0, 32], sizes = [8, 32], strides = [1, 1]} : vector<8x128xf32> to vector<8x32xf32>
    %77 = arith.mulf %76, %39 : vector<8x32xf32>
    %78 = vector.extract_strided_slice %74 {offsets = [0, 0], sizes = [8, 32], strides = [1, 1]} : vector<8x128xf32> to vector<8x32xf32>
    %79 = vector.extract_strided_slice %75 {offsets = [0, 64], sizes = [8, 32], strides = [1, 1]} : vector<8x128xf32> to vector<8x32xf32>
    %80 = arith.mulf %78, %79 : vector<8x32xf32>
    %81 = arith.addf %77, %80 : vector<8x32xf32>
    %82 = vector.extract_strided_slice %74 {offsets = [0, 96], sizes = [8, 32], strides = [1, 1]} : vector<8x128xf32> to vector<8x32xf32>
    %83 = math.tanh %81 : vector<8x32xf32>
    %84 = arith.mulf %82, %83 : vector<8x32xf32>
    %cst_39 = arith.constant dense<0.000000e+00> : vector<8x128xf32>
    %85 = tpu.matmul %61, %17, %cst_39 {dimension_numbers = #tpu.dot_dimension_numbers<[1], [0], [0], [1], [0, 0, 1, 1], [], []>} : vector<8x32xf32>, vector<32x128xf32>, vector<8x128xf32> -> vector<8x128xf32>
    %86 = arith.addf %65, %85 : vector<8x128xf32>
    %cst_40 = arith.constant 5.000000e-01 : f32
    %87 = vector.broadcast %cst_40 : f32 to vector<8x128xf32>
    %88 = arith.mulf %87, %86 : vector<8x128xf32>
    %89 = math.tanh %88 : vector<8x128xf32>
    %cst_41 = arith.constant 1.000000e+00 : f32
    %90 = vector.broadcast %cst_41 : f32 to vector<8x128xf32>
    %91 = arith.addf %89, %90 : vector<8x128xf32>
    %cst_42 = arith.constant 5.000000e-01 : f32
    %92 = vector.broadcast %cst_42 : f32 to vector<8x128xf32>
    %93 = arith.mulf %92, %91 : vector<8x128xf32>
    %94 = math.tanh %86 : vector<8x128xf32>
    %95 = vector.extract_strided_slice %93 {offsets = [0, 32], sizes = [8, 32], strides = [1, 1]} : vector<8x128xf32> to vector<8x32xf32>
    %96 = arith.mulf %95, %58 : vector<8x32xf32>
    %97 = vector.extract_strided_slice %93 {offsets = [0, 0], sizes = [8, 32], strides = [1, 1]} : vector<8x128xf32> to vector<8x32xf32>
    %98 = vector.extract_strided_slice %94 {offsets = [0, 64], sizes = [8, 32], strides = [1, 1]} : vector<8x128xf32> to vector<8x32xf32>
    %99 = arith.mulf %97, %98 : vector<8x32xf32>
    %100 = arith.addf %96, %99 : vector<8x32xf32>
    %101 = vector.extract_strided_slice %93 {offsets = [0, 96], sizes = [8, 32], strides = [1, 1]} : vector<8x128xf32> to vector<8x32xf32>
    %102 = math.tanh %100 : vector<8x32xf32>
    %103 = arith.mulf %101, %102 : vector<8x32xf32>
    %c8_43 = arith.constant 8 : index
    %c0_44 = arith.constant 0 : index
    %104 = vector.load %arg10[%c8_43, %c0_44] : memref<64x32xf32, #tpu.memory_space<vmem>>, vector<8x32xf32>
    tpu.vector_store %arg10[%c8_43, %c0_44], %84 {strides = array<i32>} : memref<64x32xf32, #tpu.memory_space<vmem>>, vector<8x32xf32>,
    %c48_45 = arith.constant 48 : index
    %c0_46 = arith.constant 0 : index
    %105 = vector.load %arg11[%c48_45, %c0_46] : memref<64x32xf32, #tpu.memory_space<vmem>>, vector<8x32xf32>
    tpu.vector_store %arg11[%c48_45, %c0_46], %103 {strides = array<i32>} : memref<64x32xf32, #tpu.memory_space<vmem>>, vector<8x32xf32>,
    %c16 = arith.constant 16 : index
    %c0_47 = arith.constant 0 : index
    %106 = vector.load %arg9[%c16, %c0_47] : memref<64x256xf32, #tpu.memory_space<vmem>>, vector<8x128xf32>
    %c40 = arith.constant 40 : index
    %c128_48 = arith.constant 128 : index
    %107 = vector.load %arg9[%c40, %c128_48] : memref<64x256xf32, #tpu.memory_space<vmem>>, vector<8x128xf32>
    %cst_49 = arith.constant dense<0.000000e+00> : vector<8x128xf32>
    %108 = tpu.matmul %84, %16, %cst_49 {dimension_numbers = #tpu.dot_dimension_numbers<[1], [0], [0], [1], [0, 0, 1, 1], [], []>} : vector<8x32xf32>, vector<32x128xf32>, vector<8x128xf32> -> vector<8x128xf32>
    %109 = arith.addf %106, %108 : vector<8x128xf32>
    %cst_50 = arith.constant 5.000000e-01 : f32
    %110 = vector.broadcast %cst_50 : f32 to vector<8x128xf32>
    %111 = arith.mulf %110, %109 : vector<8x128xf32>
    %112 = math.tanh %111 : vector<8x128xf32>
    %cst_51 = arith.constant 1.000000e+00 : f32
    %113 = vector.broadcast %cst_51 : f32 to vector<8x128xf32>
    %114 = arith.addf %112, %113 : vector<8x128xf32>
    %cst_52 = arith.constant 5.000000e-01 : f32
    %115 = vector.broadcast %cst_52 : f32 to vector<8x128xf32>
    %116 = arith.mulf %115, %114 : vector<8x128xf32>
    %117 = math.tanh %109 : vector<8x128xf32>
    %118 = vector.extract_strided_slice %116 {offsets = [0, 32], sizes = [8, 32], strides = [1, 1]} : vector<8x128xf32> to vector<8x32xf32>
    %119 = arith.mulf %118, %81 : vector<8x32xf32>
    %120 = vector.extract_strided_slice %116 {offsets = [0, 0], sizes = [8, 32], strides = [1, 1]} : vector<8x128xf32> to vector<8x32xf32>
    %121 = vector.extract_strided_slice %117 {offsets = [0, 64], sizes = [8, 32], strides = [1, 1]} : vector<8x128xf32> to vector<8x32xf32>
    %122 = arith.mulf %120, %121 : vector<8x32xf32>
    %123 = arith.addf %119, %122 : vector<8x32xf32>
    %124 = vector.extract_strided_slice %116 {offsets = [0, 96], sizes = [8, 32], strides = [1, 1]} : vector<8x128xf32> to vector<8x32xf32>
    %125 = math.tanh %123 : vector<8x32xf32>
    %126 = arith.mulf %124, %125 : vector<8x32xf32>
    %cst_53 = arith.constant dense<0.000000e+00> : vector<8x128xf32>
    %127 = tpu.matmul %103, %17, %cst_53 {dimension_numbers = #tpu.dot_dimension_numbers<[1], [0], [0], [1], [0, 0, 1, 1], [], []>} : vector<8x32xf32>, vector<32x128xf32>, vector<8x128xf32> -> vector<8x128xf32>
    %128 = arith.addf %107, %127 : vector<8x128xf32>
    %cst_54 = arith.constant 5.000000e-01 : f32
    %129 = vector.broadcast %cst_54 : f32 to vector<8x128xf32>
    %130 = arith.mulf %129, %128 : vector<8x128xf32>
    %131 = math.tanh %130 : vector<8x128xf32>
    %cst_55 = arith.constant 1.000000e+00 : f32
    %132 = vector.broadcast %cst_55 : f32 to vector<8x128xf32>
    %133 = arith.addf %131, %132 : vector<8x128xf32>
    %cst_56 = arith.constant 5.000000e-01 : f32
    %134 = vector.broadcast %cst_56 : f32 to vector<8x128xf32>
    %135 = arith.mulf %134, %133 : vector<8x128xf32>
    %136 = math.tanh %128 : vector<8x128xf32>
    %137 = vector.extract_strided_slice %135 {offsets = [0, 32], sizes = [8, 32], strides = [1, 1]} : vector<8x128xf32> to vector<8x32xf32>
    %138 = arith.mulf %137, %100 : vector<8x32xf32>
    %139 = vector.extract_strided_slice %135 {offsets = [0, 0], sizes = [8, 32], strides = [1, 1]} : vector<8x128xf32> to vector<8x32xf32>
    %140 = vector.extract_strided_slice %136 {offsets = [0, 64], sizes = [8, 32], strides = [1, 1]} : vector<8x128xf32> to vector<8x32xf32>
    %141 = arith.mulf %139, %140 : vector<8x32xf32>
    %142 = arith.addf %138, %141 : vector<8x32xf32>
    %143 = vector.extract_strided_slice %135 {offsets = [0, 96], sizes = [8, 32], strides = [1, 1]} : vector<8x128xf32> to vector<8x32xf32>
    %144 = math.tanh %142 : vector<8x32xf32>
    %145 = arith.mulf %143, %144 : vector<8x32xf32>
    %c16_57 = arith.constant 16 : index
    %c0_58 = arith.constant 0 : index
    %146 = vector.load %arg10[%c16_57, %c0_58] : memref<64x32xf32, #tpu.memory_space<vmem>>, vector<8x32xf32>
    tpu.vector_store %arg10[%c16_57, %c0_58], %126 {strides = array<i32>} : memref<64x32xf32, #tpu.memory_space<vmem>>, vector<8x32xf32>,
    %c40_59 = arith.constant 40 : index
    %c0_60 = arith.constant 0 : index
    %147 = vector.load %arg11[%c40_59, %c0_60] : memref<64x32xf32, #tpu.memory_space<vmem>>, vector<8x32xf32>
    tpu.vector_store %arg11[%c40_59, %c0_60], %145 {strides = array<i32>} : memref<64x32xf32, #tpu.memory_space<vmem>>, vector<8x32xf32>,
    %c24 = arith.constant 24 : index
    %c0_61 = arith.constant 0 : index
    %148 = vector.load %arg9[%c24, %c0_61] : memref<64x256xf32, #tpu.memory_space<vmem>>, vector<8x128xf32>
    %c32 = arith.constant 32 : index
    %c128_62 = arith.constant 128 : index
    %149 = vector.load %arg9[%c32, %c128_62] : memref<64x256xf32, #tpu.memory_space<vmem>>, vector<8x128xf32>
    %cst_63 = arith.constant dense<0.000000e+00> : vector<8x128xf32>
    %150 = tpu.matmul %126, %16, %cst_63 {dimension_numbers = #tpu.dot_dimension_numbers<[1], [0], [0], [1], [0, 0, 1, 1], [], []>} : vector<8x32xf32>, vector<32x128xf32>, vector<8x128xf32> -> vector<8x128xf32>
    %151 = arith.addf %148, %150 : vector<8x128xf32>
    %cst_64 = arith.constant 5.000000e-01 : f32
    %152 = vector.broadcast %cst_64 : f32 to vector<8x128xf32>
    %153 = arith.mulf %152, %151 : vector<8x128xf32>
    %154 = math.tanh %153 : vector<8x128xf32>
    %cst_65 = arith.constant 1.000000e+00 : f32
    %155 = vector.broadcast %cst_65 : f32 to vector<8x128xf32>
    %156 = arith.addf %154, %155 : vector<8x128xf32>
    %cst_66 = arith.constant 5.000000e-01 : f32
    %157 = vector.broadcast %cst_66 : f32 to vector<8x128xf32>
    %158 = arith.mulf %157, %156 : vector<8x128xf32>
    %159 = math.tanh %151 : vector<8x128xf32>
    %160 = vector.extract_strided_slice %158 {offsets = [0, 32], sizes = [8, 32], strides = [1, 1]} : vector<8x128xf32> to vector<8x32xf32>
    %161 = arith.mulf %160, %123 : vector<8x32xf32>
    %162 = vector.extract_strided_slice %158 {offsets = [0, 0], sizes = [8, 32], strides = [1, 1]} : vector<8x128xf32> to vector<8x32xf32>
    %163 = vector.extract_strided_slice %159 {offsets = [0, 64], sizes = [8, 32], strides = [1, 1]} : vector<8x128xf32> to vector<8x32xf32>
    %164 = arith.mulf %162, %163 : vector<8x32xf32>
    %165 = arith.addf %161, %164 : vector<8x32xf32>
    %166 = vector.extract_strided_slice %158 {offsets = [0, 96], sizes = [8, 32], strides = [1, 1]} : vector<8x128xf32> to vector<8x32xf32>
    %167 = math.tanh %165 : vector<8x32xf32>
    %168 = arith.mulf %166, %167 : vector<8x32xf32>
    %cst_67 = arith.constant dense<0.000000e+00> : vector<8x128xf32>
    %169 = tpu.matmul %145, %17, %cst_67 {dimension_numbers = #tpu.dot_dimension_numbers<[1], [0], [0], [1], [0, 0, 1, 1], [], []>} : vector<8x32xf32>, vector<32x128xf32>, vector<8x128xf32> -> vector<8x128xf32>
    %170 = arith.addf %149, %169 : vector<8x128xf32>
    %cst_68 = arith.constant 5.000000e-01 : f32
    %171 = vector.broadcast %cst_68 : f32 to vector<8x128xf32>
    %172 = arith.mulf %171, %170 : vector<8x128xf32>
    %173 = math.tanh %172 : vector<8x128xf32>
    %cst_69 = arith.constant 1.000000e+00 : f32
    %174 = vector.broadcast %cst_69 : f32 to vector<8x128xf32>
    %175 = arith.addf %173, %174 : vector<8x128xf32>
    %cst_70 = arith.constant 5.000000e-01 : f32
    %176 = vector.broadcast %cst_70 : f32 to vector<8x128xf32>
    %177 = arith.mulf %176, %175 : vector<8x128xf32>
    %178 = math.tanh %170 : vector<8x128xf32>
    %179 = vector.extract_strided_slice %177 {offsets = [0, 32], sizes = [8, 32], strides = [1, 1]} : vector<8x128xf32> to vector<8x32xf32>
    %180 = arith.mulf %179, %142 : vector<8x32xf32>
    %181 = vector.extract_strided_slice %177 {offsets = [0, 0], sizes = [8, 32], strides = [1, 1]} : vector<8x128xf32> to vector<8x32xf32>
    %182 = vector.extract_strided_slice %178 {offsets = [0, 64], sizes = [8, 32], strides = [1, 1]} : vector<8x128xf32> to vector<8x32xf32>
    %183 = arith.mulf %181, %182 : vector<8x32xf32>
    %184 = arith.addf %180, %183 : vector<8x32xf32>
    %185 = vector.extract_strided_slice %177 {offsets = [0, 96], sizes = [8, 32], strides = [1, 1]} : vector<8x128xf32> to vector<8x32xf32>
    %186 = math.tanh %184 : vector<8x32xf32>
    %187 = arith.mulf %185, %186 : vector<8x32xf32>
    %c24_71 = arith.constant 24 : index
    %c0_72 = arith.constant 0 : index
    %188 = vector.load %arg10[%c24_71, %c0_72] : memref<64x32xf32, #tpu.memory_space<vmem>>, vector<8x32xf32>
    tpu.vector_store %arg10[%c24_71, %c0_72], %168 {strides = array<i32>} : memref<64x32xf32, #tpu.memory_space<vmem>>, vector<8x32xf32>,
    %c32_73 = arith.constant 32 : index
    %c0_74 = arith.constant 0 : index
    %189 = vector.load %arg11[%c32_73, %c0_74] : memref<64x32xf32, #tpu.memory_space<vmem>>, vector<8x32xf32>
    tpu.vector_store %arg11[%c32_73, %c0_74], %187 {strides = array<i32>} : memref<64x32xf32, #tpu.memory_space<vmem>>, vector<8x32xf32>,
    %c32_75 = arith.constant 32 : index
    %c0_76 = arith.constant 0 : index
    %190 = vector.load %arg9[%c32_75, %c0_76] : memref<64x256xf32, #tpu.memory_space<vmem>>, vector<8x128xf32>
    %c24_77 = arith.constant 24 : index
    %c128_78 = arith.constant 128 : index
    %191 = vector.load %arg9[%c24_77, %c128_78] : memref<64x256xf32, #tpu.memory_space<vmem>>, vector<8x128xf32>
    %cst_79 = arith.constant dense<0.000000e+00> : vector<8x128xf32>
    %192 = tpu.matmul %168, %16, %cst_79 {dimension_numbers = #tpu.dot_dimension_numbers<[1], [0], [0], [1], [0, 0, 1, 1], [], []>} : vector<8x32xf32>, vector<32x128xf32>, vector<8x128xf32> -> vector<8x128xf32>
    %193 = arith.addf %190, %192 : vector<8x128xf32>
    %cst_80 = arith.constant 5.000000e-01 : f32
    %194 = vector.broadcast %cst_80 : f32 to vector<8x128xf32>
    %195 = arith.mulf %194, %193 : vector<8x128xf32>
    %196 = math.tanh %195 : vector<8x128xf32>
    %cst_81 = arith.constant 1.000000e+00 : f32
    %197 = vector.broadcast %cst_81 : f32 to vector<8x128xf32>
    %198 = arith.addf %196, %197 : vector<8x128xf32>
    %cst_82 = arith.constant 5.000000e-01 : f32
    %199 = vector.broadcast %cst_82 : f32 to vector<8x128xf32>
    %200 = arith.mulf %199, %198 : vector<8x128xf32>
    %201 = math.tanh %193 : vector<8x128xf32>
    %202 = vector.extract_strided_slice %200 {offsets = [0, 32], sizes = [8, 32], strides = [1, 1]} : vector<8x128xf32> to vector<8x32xf32>
    %203 = arith.mulf %202, %165 : vector<8x32xf32>
    %204 = vector.extract_strided_slice %200 {offsets = [0, 0], sizes = [8, 32], strides = [1, 1]} : vector<8x128xf32> to vector<8x32xf32>
    %205 = vector.extract_strided_slice %201 {offsets = [0, 64], sizes = [8, 32], strides = [1, 1]} : vector<8x128xf32> to vector<8x32xf32>
    %206 = arith.mulf %204, %205 : vector<8x32xf32>
    %207 = arith.addf %203, %206 : vector<8x32xf32>
    %208 = vector.extract_strided_slice %200 {offsets = [0, 96], sizes = [8, 32], strides = [1, 1]} : vector<8x128xf32> to vector<8x32xf32>
    %209 = math.tanh %207 : vector<8x32xf32>
    %210 = arith.mulf %208, %209 : vector<8x32xf32>
    %cst_83 = arith.constant dense<0.000000e+00> : vector<8x128xf32>
    %211 = tpu.matmul %187, %17, %cst_83 {dimension_numbers = #tpu.dot_dimension_numbers<[1], [0], [0], [1], [0, 0, 1, 1], [], []>} : vector<8x32xf32>, vector<32x128xf32>, vector<8x128xf32> -> vector<8x128xf32>
    %212 = arith.addf %191, %211 : vector<8x128xf32>
    %cst_84 = arith.constant 5.000000e-01 : f32
    %213 = vector.broadcast %cst_84 : f32 to vector<8x128xf32>
    %214 = arith.mulf %213, %212 : vector<8x128xf32>
    %215 = math.tanh %214 : vector<8x128xf32>
    %cst_85 = arith.constant 1.000000e+00 : f32
    %216 = vector.broadcast %cst_85 : f32 to vector<8x128xf32>
    %217 = arith.addf %215, %216 : vector<8x128xf32>
    %cst_86 = arith.constant 5.000000e-01 : f32
    %218 = vector.broadcast %cst_86 : f32 to vector<8x128xf32>
    %219 = arith.mulf %218, %217 : vector<8x128xf32>
    %220 = math.tanh %212 : vector<8x128xf32>
    %221 = vector.extract_strided_slice %219 {offsets = [0, 32], sizes = [8, 32], strides = [1, 1]} : vector<8x128xf32> to vector<8x32xf32>
    %222 = arith.mulf %221, %184 : vector<8x32xf32>
    %223 = vector.extract_strided_slice %219 {offsets = [0, 0], sizes = [8, 32], strides = [1, 1]} : vector<8x128xf32> to vector<8x32xf32>
    %224 = vector.extract_strided_slice %220 {offsets = [0, 64], sizes = [8, 32], strides = [1, 1]} : vector<8x128xf32> to vector<8x32xf32>
    %225 = arith.mulf %223, %224 : vector<8x32xf32>
    %226 = arith.addf %222, %225 : vector<8x32xf32>
    %227 = vector.extract_strided_slice %219 {offsets = [0, 96], sizes = [8, 32], strides = [1, 1]} : vector<8x128xf32> to vector<8x32xf32>
    %228 = math.tanh %226 : vector<8x32xf32>
    %229 = arith.mulf %227, %228 : vector<8x32xf32>
    %c32_87 = arith.constant 32 : index
    %c0_88 = arith.constant 0 : index
    %230 = vector.load %arg10[%c32_87, %c0_88] : memref<64x32xf32, #tpu.memory_space<vmem>>, vector<8x32xf32>
    tpu.vector_store %arg10[%c32_87, %c0_88], %210 {strides = array<i32>} : memref<64x32xf32, #tpu.memory_space<vmem>>, vector<8x32xf32>,
    %c24_89 = arith.constant 24 : index
    %c0_90 = arith.constant 0 : index
    %231 = vector.load %arg11[%c24_89, %c0_90] : memref<64x32xf32, #tpu.memory_space<vmem>>, vector<8x32xf32>
    tpu.vector_store %arg11[%c24_89, %c0_90], %229 {strides = array<i32>} : memref<64x32xf32, #tpu.memory_space<vmem>>, vector<8x32xf32>,
    %c40_91 = arith.constant 40 : index
    %c0_92 = arith.constant 0 : index
    %232 = vector.load %arg9[%c40_91, %c0_92] : memref<64x256xf32, #tpu.memory_space<vmem>>, vector<8x128xf32>
    %c16_93 = arith.constant 16 : index
    %c128_94 = arith.constant 128 : index
    %233 = vector.load %arg9[%c16_93, %c128_94] : memref<64x256xf32, #tpu.memory_space<vmem>>, vector<8x128xf32>
    %cst_95 = arith.constant dense<0.000000e+00> : vector<8x128xf32>
    %234 = tpu.matmul %210, %16, %cst_95 {dimension_numbers = #tpu.dot_dimension_numbers<[1], [0], [0], [1], [0, 0, 1, 1], [], []>} : vector<8x32xf32>, vector<32x128xf32>, vector<8x128xf32> -> vector<8x128xf32>
    %235 = arith.addf %232, %234 : vector<8x128xf32>
    %cst_96 = arith.constant 5.000000e-01 : f32
    %236 = vector.broadcast %cst_96 : f32 to vector<8x128xf32>
    %237 = arith.mulf %236, %235 : vector<8x128xf32>
    %238 = math.tanh %237 : vector<8x128xf32>
    %cst_97 = arith.constant 1.000000e+00 : f32
    %239 = vector.broadcast %cst_97 : f32 to vector<8x128xf32>
    %240 = arith.addf %238, %239 : vector<8x128xf32>
    %cst_98 = arith.constant 5.000000e-01 : f32
    %241 = vector.broadcast %cst_98 : f32 to vector<8x128xf32>
    %242 = arith.mulf %241, %240 : vector<8x128xf32>
    %243 = math.tanh %235 : vector<8x128xf32>
    %244 = vector.extract_strided_slice %242 {offsets = [0, 32], sizes = [8, 32], strides = [1, 1]} : vector<8x128xf32> to vector<8x32xf32>
    %245 = arith.mulf %244, %207 : vector<8x32xf32>
    %246 = vector.extract_strided_slice %242 {offsets = [0, 0], sizes = [8, 32], strides = [1, 1]} : vector<8x128xf32> to vector<8x32xf32>
    %247 = vector.extract_strided_slice %243 {offsets = [0, 64], sizes = [8, 32], strides = [1, 1]} : vector<8x128xf32> to vector<8x32xf32>
    %248 = arith.mulf %246, %247 : vector<8x32xf32>
    %249 = arith.addf %245, %248 : vector<8x32xf32>
    %250 = vector.extract_strided_slice %242 {offsets = [0, 96], sizes = [8, 32], strides = [1, 1]} : vector<8x128xf32> to vector<8x32xf32>
    %251 = math.tanh %249 : vector<8x32xf32>
    %252 = arith.mulf %250, %251 : vector<8x32xf32>
    %cst_99 = arith.constant dense<0.000000e+00> : vector<8x128xf32>
    %253 = tpu.matmul %229, %17, %cst_99 {dimension_numbers = #tpu.dot_dimension_numbers<[1], [0], [0], [1], [0, 0, 1, 1], [], []>} : vector<8x32xf32>, vector<32x128xf32>, vector<8x128xf32> -> vector<8x128xf32>
    %254 = arith.addf %233, %253 : vector<8x128xf32>
    %cst_100 = arith.constant 5.000000e-01 : f32
    %255 = vector.broadcast %cst_100 : f32 to vector<8x128xf32>
    %256 = arith.mulf %255, %254 : vector<8x128xf32>
    %257 = math.tanh %256 : vector<8x128xf32>
    %cst_101 = arith.constant 1.000000e+00 : f32
    %258 = vector.broadcast %cst_101 : f32 to vector<8x128xf32>
    %259 = arith.addf %257, %258 : vector<8x128xf32>
    %cst_102 = arith.constant 5.000000e-01 : f32
    %260 = vector.broadcast %cst_102 : f32 to vector<8x128xf32>
    %261 = arith.mulf %260, %259 : vector<8x128xf32>
    %262 = math.tanh %254 : vector<8x128xf32>
    %263 = vector.extract_strided_slice %261 {offsets = [0, 32], sizes = [8, 32], strides = [1, 1]} : vector<8x128xf32> to vector<8x32xf32>
    %264 = arith.mulf %263, %226 : vector<8x32xf32>
    %265 = vector.extract_strided_slice %261 {offsets = [0, 0], sizes = [8, 32], strides = [1, 1]} : vector<8x128xf32> to vector<8x32xf32>
    %266 = vector.extract_strided_slice %262 {offsets = [0, 64], sizes = [8, 32], strides = [1, 1]} : vector<8x128xf32> to vector<8x32xf32>
    %267 = arith.mulf %265, %266 : vector<8x32xf32>
    %268 = arith.addf %264, %267 : vector<8x32xf32>
    %269 = vector.extract_strided_slice %261 {offsets = [0, 96], sizes = [8, 32], strides = [1, 1]} : vector<8x128xf32> to vector<8x32xf32>
    %270 = math.tanh %268 : vector<8x32xf32>
    %271 = arith.mulf %269, %270 : vector<8x32xf32>
    %c40_103 = arith.constant 40 : index
    %c0_104 = arith.constant 0 : index
    %272 = vector.load %arg10[%c40_103, %c0_104] : memref<64x32xf32, #tpu.memory_space<vmem>>, vector<8x32xf32>
    tpu.vector_store %arg10[%c40_103, %c0_104], %252 {strides = array<i32>} : memref<64x32xf32, #tpu.memory_space<vmem>>, vector<8x32xf32>,
    %c16_105 = arith.constant 16 : index
    %c0_106 = arith.constant 0 : index
    %273 = vector.load %arg11[%c16_105, %c0_106] : memref<64x32xf32, #tpu.memory_space<vmem>>, vector<8x32xf32>
    tpu.vector_store %arg11[%c16_105, %c0_106], %271 {strides = array<i32>} : memref<64x32xf32, #tpu.memory_space<vmem>>, vector<8x32xf32>,
    %c48_107 = arith.constant 48 : index
    %c0_108 = arith.constant 0 : index
    %274 = vector.load %arg9[%c48_107, %c0_108] : memref<64x256xf32, #tpu.memory_space<vmem>>, vector<8x128xf32>
    %c8_109 = arith.constant 8 : index
    %c128_110 = arith.constant 128 : index
    %275 = vector.load %arg9[%c8_109, %c128_110] : memref<64x256xf32, #tpu.memory_space<vmem>>, vector<8x128xf32>
    %cst_111 = arith.constant dense<0.000000e+00> : vector<8x128xf32>
    %276 = tpu.matmul %252, %16, %cst_111 {dimension_numbers = #tpu.dot_dimension_numbers<[1], [0], [0], [1], [0, 0, 1, 1], [], []>} : vector<8x32xf32>, vector<32x128xf32>, vector<8x128xf32> -> vector<8x128xf32>
    %277 = arith.addf %274, %276 : vector<8x128xf32>
    %cst_112 = arith.constant 5.000000e-01 : f32
    %278 = vector.broadcast %cst_112 : f32 to vector<8x128xf32>
    %279 = arith.mulf %278, %277 : vector<8x128xf32>
    %280 = math.tanh %279 : vector<8x128xf32>
    %cst_113 = arith.constant 1.000000e+00 : f32
    %281 = vector.broadcast %cst_113 : f32 to vector<8x128xf32>
    %282 = arith.addf %280, %281 : vector<8x128xf32>
    %cst_114 = arith.constant 5.000000e-01 : f32
    %283 = vector.broadcast %cst_114 : f32 to vector<8x128xf32>
    %284 = arith.mulf %283, %282 : vector<8x128xf32>
    %285 = math.tanh %277 : vector<8x128xf32>
    %286 = vector.extract_strided_slice %284 {offsets = [0, 32], sizes = [8, 32], strides = [1, 1]} : vector<8x128xf32> to vector<8x32xf32>
    %287 = arith.mulf %286, %249 : vector<8x32xf32>
    %288 = vector.extract_strided_slice %284 {offsets = [0, 0], sizes = [8, 32], strides = [1, 1]} : vector<8x128xf32> to vector<8x32xf32>
    %289 = vector.extract_strided_slice %285 {offsets = [0, 64], sizes = [8, 32], strides = [1, 1]} : vector<8x128xf32> to vector<8x32xf32>
    %290 = arith.mulf %288, %289 : vector<8x32xf32>
    %291 = arith.addf %287, %290 : vector<8x32xf32>
    %292 = vector.extract_strided_slice %284 {offsets = [0, 96], sizes = [8, 32], strides = [1, 1]} : vector<8x128xf32> to vector<8x32xf32>
    %293 = math.tanh %291 : vector<8x32xf32>
    %294 = arith.mulf %292, %293 : vector<8x32xf32>
    %cst_115 = arith.constant dense<0.000000e+00> : vector<8x128xf32>
    %295 = tpu.matmul %271, %17, %cst_115 {dimension_numbers = #tpu.dot_dimension_numbers<[1], [0], [0], [1], [0, 0, 1, 1], [], []>} : vector<8x32xf32>, vector<32x128xf32>, vector<8x128xf32> -> vector<8x128xf32>
    %296 = arith.addf %275, %295 : vector<8x128xf32>
    %cst_116 = arith.constant 5.000000e-01 : f32
    %297 = vector.broadcast %cst_116 : f32 to vector<8x128xf32>
    %298 = arith.mulf %297, %296 : vector<8x128xf32>
    %299 = math.tanh %298 : vector<8x128xf32>
    %cst_117 = arith.constant 1.000000e+00 : f32
    %300 = vector.broadcast %cst_117 : f32 to vector<8x128xf32>
    %301 = arith.addf %299, %300 : vector<8x128xf32>
    %cst_118 = arith.constant 5.000000e-01 : f32
    %302 = vector.broadcast %cst_118 : f32 to vector<8x128xf32>
    %303 = arith.mulf %302, %301 : vector<8x128xf32>
    %304 = math.tanh %296 : vector<8x128xf32>
    %305 = vector.extract_strided_slice %303 {offsets = [0, 32], sizes = [8, 32], strides = [1, 1]} : vector<8x128xf32> to vector<8x32xf32>
    %306 = arith.mulf %305, %268 : vector<8x32xf32>
    %307 = vector.extract_strided_slice %303 {offsets = [0, 0], sizes = [8, 32], strides = [1, 1]} : vector<8x128xf32> to vector<8x32xf32>
    %308 = vector.extract_strided_slice %304 {offsets = [0, 64], sizes = [8, 32], strides = [1, 1]} : vector<8x128xf32> to vector<8x32xf32>
    %309 = arith.mulf %307, %308 : vector<8x32xf32>
    %310 = arith.addf %306, %309 : vector<8x32xf32>
    %311 = vector.extract_strided_slice %303 {offsets = [0, 96], sizes = [8, 32], strides = [1, 1]} : vector<8x128xf32> to vector<8x32xf32>
    %312 = math.tanh %310 : vector<8x32xf32>
    %313 = arith.mulf %311, %312 : vector<8x32xf32>
    %c48_119 = arith.constant 48 : index
    %c0_120 = arith.constant 0 : index
    %314 = vector.load %arg10[%c48_119, %c0_120] : memref<64x32xf32, #tpu.memory_space<vmem>>, vector<8x32xf32>
    tpu.vector_store %arg10[%c48_119, %c0_120], %294 {strides = array<i32>} : memref<64x32xf32, #tpu.memory_space<vmem>>, vector<8x32xf32>,
    %c8_121 = arith.constant 8 : index
    %c0_122 = arith.constant 0 : index
    %315 = vector.load %arg11[%c8_121, %c0_122] : memref<64x32xf32, #tpu.memory_space<vmem>>, vector<8x32xf32>
    tpu.vector_store %arg11[%c8_121, %c0_122], %313 {strides = array<i32>} : memref<64x32xf32, #tpu.memory_space<vmem>>, vector<8x32xf32>,
    %c56_123 = arith.constant 56 : index
    %c0_124 = arith.constant 0 : index
    %316 = vector.load %arg9[%c56_123, %c0_124] : memref<64x256xf32, #tpu.memory_space<vmem>>, vector<8x128xf32>
    %c0_125 = arith.constant 0 : index
    %c128_126 = arith.constant 128 : index
    %317 = vector.load %arg9[%c0_125, %c128_126] : memref<64x256xf32, #tpu.memory_space<vmem>>, vector<8x128xf32>
    %cst_127 = arith.constant dense<0.000000e+00> : vector<8x128xf32>
    %318 = tpu.matmul %294, %16, %cst_127 {dimension_numbers = #tpu.dot_dimension_numbers<[1], [0], [0], [1], [0, 0, 1, 1], [], []>} : vector<8x32xf32>, vector<32x128xf32>, vector<8x128xf32> -> vector<8x128xf32>
    %319 = arith.addf %316, %318 : vector<8x128xf32>
    %cst_128 = arith.constant 5.000000e-01 : f32
    %320 = vector.broadcast %cst_128 : f32 to vector<8x128xf32>
    %321 = arith.mulf %320, %319 : vector<8x128xf32>
    %322 = math.tanh %321 : vector<8x128xf32>
    %cst_129 = arith.constant 1.000000e+00 : f32
    %323 = vector.broadcast %cst_129 : f32 to vector<8x128xf32>
    %324 = arith.addf %322, %323 : vector<8x128xf32>
    %cst_130 = arith.constant 5.000000e-01 : f32
    %325 = vector.broadcast %cst_130 : f32 to vector<8x128xf32>
    %326 = arith.mulf %325, %324 : vector<8x128xf32>
    %327 = math.tanh %319 : vector<8x128xf32>
    %328 = vector.extract_strided_slice %326 {offsets = [0, 32], sizes = [8, 32], strides = [1, 1]} : vector<8x128xf32> to vector<8x32xf32>
    %329 = arith.mulf %328, %291 : vector<8x32xf32>
    %330 = vector.extract_strided_slice %326 {offsets = [0, 0], sizes = [8, 32], strides = [1, 1]} : vector<8x128xf32> to vector<8x32xf32>
    %331 = vector.extract_strided_slice %327 {offsets = [0, 64], sizes = [8, 32], strides = [1, 1]} : vector<8x128xf32> to vector<8x32xf32>
    %332 = arith.mulf %330, %331 : vector<8x32xf32>
    %333 = arith.addf %329, %332 : vector<8x32xf32>
    %334 = vector.extract_strided_slice %326 {offsets = [0, 96], sizes = [8, 32], strides = [1, 1]} : vector<8x128xf32> to vector<8x32xf32>
    %335 = math.tanh %333 : vector<8x32xf32>
    %336 = arith.mulf %334, %335 : vector<8x32xf32>
    %cst_131 = arith.constant dense<0.000000e+00> : vector<8x128xf32>
    %337 = tpu.matmul %313, %17, %cst_131 {dimension_numbers = #tpu.dot_dimension_numbers<[1], [0], [0], [1], [0, 0, 1, 1], [], []>} : vector<8x32xf32>, vector<32x128xf32>, vector<8x128xf32> -> vector<8x128xf32>
    %338 = arith.addf %317, %337 : vector<8x128xf32>
    %cst_132 = arith.constant 5.000000e-01 : f32
    %339 = vector.broadcast %cst_132 : f32 to vector<8x128xf32>
    %340 = arith.mulf %339, %338 : vector<8x128xf32>
    %341 = math.tanh %340 : vector<8x128xf32>
    %cst_133 = arith.constant 1.000000e+00 : f32
    %342 = vector.broadcast %cst_133 : f32 to vector<8x128xf32>
    %343 = arith.addf %341, %342 : vector<8x128xf32>
    %cst_134 = arith.constant 5.000000e-01 : f32
    %344 = vector.broadcast %cst_134 : f32 to vector<8x128xf32>
    %345 = arith.mulf %344, %343 : vector<8x128xf32>
    %346 = math.tanh %338 : vector<8x128xf32>
    %347 = vector.extract_strided_slice %345 {offsets = [0, 32], sizes = [8, 32], strides = [1, 1]} : vector<8x128xf32> to vector<8x32xf32>
    %348 = arith.mulf %347, %310 : vector<8x32xf32>
    %349 = vector.extract_strided_slice %345 {offsets = [0, 0], sizes = [8, 32], strides = [1, 1]} : vector<8x128xf32> to vector<8x32xf32>
    %350 = vector.extract_strided_slice %346 {offsets = [0, 64], sizes = [8, 32], strides = [1, 1]} : vector<8x128xf32> to vector<8x32xf32>
    %351 = arith.mulf %349, %350 : vector<8x32xf32>
    %352 = arith.addf %348, %351 : vector<8x32xf32>
    %353 = vector.extract_strided_slice %345 {offsets = [0, 96], sizes = [8, 32], strides = [1, 1]} : vector<8x128xf32> to vector<8x32xf32>
    %354 = math.tanh %352 : vector<8x32xf32>
    %355 = arith.mulf %353, %354 : vector<8x32xf32>
    %c56_135 = arith.constant 56 : index
    %c0_136 = arith.constant 0 : index
    %356 = vector.load %arg10[%c56_135, %c0_136] : memref<64x32xf32, #tpu.memory_space<vmem>>, vector<8x32xf32>
    tpu.vector_store %arg10[%c56_135, %c0_136], %336 {strides = array<i32>} : memref<64x32xf32, #tpu.memory_space<vmem>>, vector<8x32xf32>,
    %c0_137 = arith.constant 0 : index
    %c0_138 = arith.constant 0 : index
    %357 = vector.load %arg11[%c0_137, %c0_138] : memref<64x32xf32, #tpu.memory_space<vmem>>, vector<8x32xf32>
    tpu.vector_store %arg11[%c0_137, %c0_138], %355 {strides = array<i32>} : memref<64x32xf32, #tpu.memory_space<vmem>>, vector<8x32xf32>,
    %c0_139 = arith.constant 0 : index
    %c0_140 = arith.constant 0 : index
    %358 = vector.load %arg10[%c0_139, %c0_140] : memref<64x32xf32, #tpu.memory_space<vmem>>, vector<64x32xf32>
    %cst_141 = arith.constant 0.000000e+00 : f32
    %359 = vector.broadcast %cst_141 : f32 to vector<64x32xf32>
    %360 = arith.maximumf %358, %359 : vector<64x32xf32>
    %c0_142 = arith.constant 0 : index
    %c0_143 = arith.constant 0 : index
    %361 = vector.load %arg11[%c0_142, %c0_143] : memref<64x32xf32, #tpu.memory_space<vmem>>, vector<64x32xf32>
    %cst_144 = arith.constant 0.000000e+00 : f32
    %362 = vector.broadcast %cst_144 : f32 to vector<64x32xf32>
    %363 = arith.maximumf %361, %362 : vector<64x32xf32>
    %c0_145 = arith.constant 0 : index
    %c0_146 = arith.constant 0 : index
    %364 = vector.load %arg6[%c0_145, %c0_146] : memref<64x128xf32, #tpu.memory_space<vmem>>, vector<32x128xf32>
    %cst_147 = arith.constant dense<0.000000e+00> : vector<64x128xf32>
    %365 = tpu.matmul %360, %364, %cst_147 {dimension_numbers = #tpu.dot_dimension_numbers<[1], [0], [0], [1], [0, 0, 1, 1], [], []>} : vector<64x32xf32>, vector<32x128xf32>, vector<64x128xf32> -> vector<64x128xf32>
    %c32_148 = arith.constant 32 : index
    %c0_149 = arith.constant 0 : index
    %366 = vector.load %arg6[%c32_148, %c0_149] : memref<64x128xf32, #tpu.memory_space<vmem>>, vector<32x128xf32>
    %cst_150 = arith.constant dense<0.000000e+00> : vector<64x128xf32>
    %367 = tpu.matmul %363, %366, %cst_150 {dimension_numbers = #tpu.dot_dimension_numbers<[1], [0], [0], [1], [0, 0, 1, 1], [], []>} : vector<64x32xf32>, vector<32x128xf32>, vector<64x128xf32> -> vector<64x128xf32>
    %368 = arith.addf %365, %367 : vector<64x128xf32>
    %c0_151 = arith.constant 0 : index
    %c0_152 = arith.constant 0 : index
    %369 = vector.load %arg7[%c0_151, %c0_152] : memref<1x128xf32, #tpu.memory_space<vmem>>, vector<1x128xf32>
    %370 = vector.broadcast %369 : vector<1x128xf32> to vector<64x128xf32>
    %371 = arith.addf %368, %370 : vector<64x128xf32>
    %c0_153 = arith.constant 0 : index
    %c0_154 = arith.constant 0 : index
    %372 = vector.load %arg8[%c0_153, %c0_154] : memref<64x128xf32, #tpu.memory_space<vmem>>, vector<64x128xf32>
    tpu.vector_store %arg8[%c0_153, %c0_154], %371 {strides = array<i32>} : memref<64x128xf32, #tpu.memory_space<vmem>>, vector<64x128xf32>,
    return
  }
}

</mosaic_0001>

<llo_original>
// kernel: morph_lstm_forward.1
$region0: #{morph_lstm_forward.1}
  #allocation0 [shape = 'u32[]', space=smem, size = 0x4, offset = 0x4, fixed_abs, tag = 'smem constant byte address 0x4 - core index']
  #allocation1 [shape = 'u32[72,128]{1,0:T(1,128)}', space=vmem, size = 0x9000, scoped, tag = 'internal scratch']
  #allocation2 [shape = 'f32[64,256]{1,0:T(8,128)}', space=vmem, size = 0x10000, scoped, tag = 'scratch operand']
  #allocation3 [shape = 'f32[64,32]{1,0:T(8,128)}', space=vmem, size = 0x8000, scoped, tag = 'scratch operand']
  #allocation4 [shape = 'f32[64,32]{1,0:T(8,128)}', space=vmem, size = 0x8000, scoped, tag = 'scratch operand']
  %s0 = inlined_call_operand.vmem [shape: s32[64,1], index: 0, kind: input, shape index: {}]
  %s1 = inlined_call_operand.vmem [shape: f32[50,32], index: 1, kind: input, shape index: {}]
  %s2 = inlined_call_operand.vmem [shape: f32[32,256], index: 2, kind: input, shape index: {}]
  %s3 = inlined_call_operand.vmem [shape: f32[1,256], index: 3, kind: input, shape index: {}]
  %s4 = inlined_call_operand.vmem [shape: f32[32,128], index: 4, kind: input, shape index: {}]
  %s5 = inlined_call_operand.vmem [shape: f32[32,128], index: 5, kind: input, shape index: {}]
  %s6 = inlined_call_operand.vmem [shape: f32[64,128], index: 6, kind: input, shape index: {}]
  %s7 = inlined_call_operand.vmem [shape: f32[1,128], index: 7, kind: input, shape index: {}]
  %s8 = inlined_call_operand.vmem [shape: f32[64,128], index: 8, kind: output, shape index: {}]
  %s9 = sld [smem:[#allocation0]]
  $region42: #{morph_lstm_forward.1} parent=0
    _
  %s11 = ssub.s32 1, %s9
  %s12 = scalar_select 0, %s11, %s9
  // Predicated region
  $region2: #{morph_lstm_forward.1} parent=0 // pred_check
    _
  $region3: #{morph_lstm_forward.1} parent=0 // pred_check_branch
    %14 = sbr.rel (0) target = $region5
  $region4: #{morph_lstm_forward.1} parent=0 // pred_region
    _
  $region5: #{morph_lstm_forward.1} parent=0 // pred_fallthru
    _
  // Predicated region
  $region6: #{morph_lstm_forward.1} parent=0 // pred_check
    _
  $region7: #{morph_lstm_forward.1} parent=0 // pred_check_branch
    %16 = sbr.rel (0) target = $region9
  $region8: #{morph_lstm_forward.1} parent=0 // pred_region
    _
  $region9: #{morph_lstm_forward.1} parent=0 // pred_fallthru
    _
  // Predicated region
  $region10: #{morph_lstm_forward.1} parent=0 // pred_check
    _
  $region11: #{morph_lstm_forward.1} parent=0 // pred_check_branch
    %18 = sbr.rel (0) target = $region13
  $region12: #{morph_lstm_forward.1} parent=0 // pred_region
    _
  $region13: #{morph_lstm_forward.1} parent=0 // pred_fallthru
    _
  // Predicated region
  $region14: #{morph_lstm_forward.1} parent=0 // pred_check
    _
  $region15: #{morph_lstm_forward.1} parent=0 // pred_check_branch
    %20 = sbr.rel (0) target = $region17
  $region16: #{morph_lstm_forward.1} parent=0 // pred_region
    _
  $region17: #{morph_lstm_forward.1} parent=0 // pred_fallthru
    _
  // Predicated region
  $region18: #{morph_lstm_forward.1} parent=0 // pred_check
    _
  $region19: #{morph_lstm_forward.1} parent=0 // pred_check_branch
    %22 = sbr.rel (0) target = $region21
  $region20: #{morph_lstm_forward.1} parent=0 // pred_region
    _
  $region21: #{morph_lstm_forward.1} parent=0 // pred_fallthru
    _
  // Predicated region
  $region22: #{morph_lstm_forward.1} parent=0 // pred_check
    _
  $region23: #{morph_lstm_forward.1} parent=0 // pred_check_branch
    %24 = sbr.rel (0) target = $region25
  $region24: #{morph_lstm_forward.1} parent=0 // pred_region
    _
  $region25: #{morph_lstm_forward.1} parent=0 // pred_fallthru
    _
  // Predicated region
  $region26: #{morph_lstm_forward.1} parent=0 // pred_check
    _
  $region27: #{morph_lstm_forward.1} parent=0 // pred_check_branch
    %26 = sbr.rel (0) target = $region29
  $region28: #{morph_lstm_forward.1} parent=0 // pred_region
    _
  $region29: #{morph_lstm_forward.1} parent=0 // pred_fallthru
    _
  // Predicated region
  $region30: #{morph_lstm_forward.1} parent=0 // pred_check
    _
  $region31: #{morph_lstm_forward.1} parent=0 // pred_check_branch
    %28 = sbr.rel (0) target = $region33
  $region32: #{morph_lstm_forward.1} parent=0 // pred_region
    _
  $region33: #{morph_lstm_forward.1} parent=0 // pred_fallthru
    _
  %v29 = vld [vmem:[%s0] sm:$0xff]
  %v30 = vld [vmem:[%s0 + $0x8] sm:$0xff]
  %v31 = vld [vmem:[%s0 + $0x10] sm:$0xff]
  %v32 = vld [vmem:[%s0 + $0x18] sm:$0xff]
  %v33 = vld [vmem:[%s0 + $0x20] sm:$0xff]
  %v34 = vld [vmem:[%s0 + $0x28] sm:$0xff]
  %v35 = vld [vmem:[%s0 + $0x30] sm:$0xff]
  %v36 = vld [vmem:[%s0 + $0x38] sm:$0xff]
  %v37 = vlaneseq
  %v38 = vand.u32 %v37, 127
  %39 = vset.pattern.permute.xlu0 0
  %40 = vperm.xlu0 %39, %v29
  %v41 = vpop.permute.xlu0 %40
  %42 = vset.pattern.permute.xlu0 0
  %43 = vperm.xlu0 %42, %v30
  %v44 = vpop.permute.xlu0 %43
  %45 = vset.pattern.permute.xlu0 0
  %46 = vperm.xlu0 %45, %v31
  %v47 = vpop.permute.xlu0 %46
  %48 = vset.pattern.permute.xlu0 0
  %49 = vperm.xlu0 %48, %v32
  %v50 = vpop.permute.xlu0 %49
  %51 = vset.pattern.permute.xlu0 0
  %52 = vperm.xlu0 %51, %v33
  %v53 = vpop.permute.xlu0 %52
  %54 = vset.pattern.permute.xlu0 0
  %55 = vperm.xlu0 %54, %v34
  %v56 = vpop.permute.xlu0 %55
  %57 = vset.pattern.permute.xlu0 0
  %58 = vperm.xlu0 %57, %v35
  %v59 = vpop.permute.xlu0 %58
  %60 = vset.pattern.permute.xlu0 0
  %61 = vperm.xlu0 %60, %v36
  %v62 = vpop.permute.xlu0 %61
  %vm63 = vcmp.eq.s32.totalorder %v38, %v41
  %vm64 = vcmp.eq.s32.totalorder %v38, %v44
  %vm65 = vcmp.eq.s32.totalorder %v38, %v47
  %vm66 = vcmp.eq.s32.totalorder %v38, %v50
  %vm67 = vcmp.eq.s32.totalorder %v38, %v53
  %vm68 = vcmp.eq.s32.totalorder %v38, %v56
  %vm69 = vcmp.eq.s32.totalorder %v38, %v59
  %vm70 = vcmp.eq.s32.totalorder %v38, %v62
  %v71 = vsel %vm63, 1, 0
  %v72 = vsel %vm64, 1, 0
  %v73 = vsel %vm65, 1, 0
  %v74 = vsel %vm66, 1, 0
  %v75 = vsel %vm67, 1, 0
  %v76 = vsel %vm68, 1, 0
  %v77 = vsel %vm69, 1, 0
  %v78 = vsel %vm70, 1, 0
  %v79 = vcvt.s32.f32 %v71
  %v80 = vcvt.s32.f32 %v72
  %v81 = vcvt.s32.f32 %v73
  %v82 = vcvt.s32.f32 %v74
  %v83 = vcvt.s32.f32 %v75
  %v84 = vcvt.s32.f32 %v76
  %v85 = vcvt.s32.f32 %v77
  %v86 = vcvt.s32.f32 %v78
  %v87 = vld [vmem:[%s1] sm:$0xff]
  %v88 = vld [vmem:[%s1 + $0x8] sm:$0xff]
  %v89 = vld [vmem:[%s1 + $0x10] sm:$0xff]
  %v90 = vld [vmem:[%s1 + $0x18] sm:$0xff]
  %v91 = vld [vmem:[%s1 + $0x20] sm:$0xff]
  %v92 = vld [vmem:[%s1 + $0x28] sm:$0xff]
  %v93 = vld [vmem:[%s1 + $0x30] sm:$0x3]
  %vm94 = vcmask 408576
  %v96 = vsel %vm94, %v79, 0
  %v99 = vsel %vm94, %v80, 0
  %v102 = vsel %vm94, %v81, 0
  %v105 = vsel %vm94, %v82, 0
  %v108 = vsel %vm94, %v83, 0
  %v111 = vsel %vm94, %v84, 0
  %v114 = vsel %vm94, %v85, 0
  %v117 = vsel %vm94, %v86, 0
  %vm119 = vcmask 1041408
  %v121 = vsel %vm119, %v93, 0
  %123 = vmatpush.msra.mxu0 0.0
  %124 = vmatpush.msra.mxu0 0.0
  %125 = vmatpush.msra.mxu0 0.0
  %126 = vmatpush.msra.mxu0 0.0
  %127 = vmatpush.msra.mxu0 0.0
  %128 = vmatpush.msra.mxu0 0.0
  %129 = vmatpush.msra.mxu0 0.0
  %130 = vmatpush.msra.mxu0 0.0
  %131 = vmatpush.msra.mxu0 0.0
  %132 = vmatpush.msra.mxu0 %v121
  %133 = vmatpush.msra.mxu0 %v92
  %134 = vmatpush.msra.mxu0 %v91
  %135 = vmatpush.msra.mxu0 %v90
  %136 = vmatpush.msra.mxu0 %v89
  %137 = vmatpush.msra.mxu0 %v88
  %138 = vmatpush.msra.mxu0 %v87
  %139 = vmatmul.f32.gmra.mxu0 %v96
  %v140 = vpop.f32.mrf.mxu0
  %v141 = vadd.f32 0.0, %v140
  %142 = vmatmul.f32.gmra.mxu0 %v99
  %v143 = vpop.f32.mrf.mxu0
  %v144 = vadd.f32 0.0, %v143
  %145 = vmatmul.f32.gmra.mxu0 %v102
  %v146 = vpop.f32.mrf.mxu0
  %v147 = vadd.f32 0.0, %v146
  %148 = vmatmul.f32.gmra.mxu0 %v105
  %v149 = vpop.f32.mrf.mxu0
  %v150 = vadd.f32 0.0, %v149
  %151 = vmatmul.f32.gmra.mxu0 %v108
  %v152 = vpop.f32.mrf.mxu0
  %v153 = vadd.f32 0.0, %v152
  %154 = vmatmul.f32.gmra.mxu0 %v111
  %v155 = vpop.f32.mrf.mxu0
  %v156 = vadd.f32 0.0, %v155
  %157 = vmatmul.f32.gmra.mxu0 %v114
  %v158 = vpop.f32.mrf.mxu0
  %v159 = vadd.f32 0.0, %v158
  %160 = vmatmul.f32.gmra.mxu0 %v117
  %v161 = vpop.f32.mrf.mxu0
  %v162 = vadd.f32 0.0, %v161
  %163 = vdwg.mxu0
  %v164 = vmax.f32 %v141, 0.0
  %v165 = vmax.f32 %v144, 0.0
  %v166 = vmax.f32 %v147, 0.0
  %v167 = vmax.f32 %v150, 0.0
  %v168 = vmax.f32 %v153, 0.0
  %v169 = vmax.f32 %v156, 0.0
  %v170 = vmax.f32 %v159, 0.0
  %v171 = vmax.f32 %v162, 0.0
  %v172 = vld [vmem:[%s2] sm:$0xff]
  %v173 = vld [vmem:[%s2 + $0x8] sm:$0xff]
  %v174 = vld [vmem:[%s2 + $0x10] sm:$0xff]
  %v175 = vld [vmem:[%s2 + $0x18] sm:$0xff]
  %v176 = vld [vmem:[%s2 + $0x20] sm:$0xff]
  %v177 = vld [vmem:[%s2 + $0x28] sm:$0xff]
  %v178 = vld [vmem:[%s2 + $0x30] sm:$0xff]
  %v179 = vld [vmem:[%s2 + $0x38] sm:$0xff]
  %v180 = vld [vmem:[%s3] sm:$0x3]
  %v182 = vperm.slane %v180, 0
  %v183 = vperm.slane %v180, 1
  %vm186 = vcmask 261120
  %v188 = vsel %vm186, %v164, 0
  %v191 = vsel %vm186, %v165, 0
  %v194 = vsel %vm186, %v166, 0
  %v197 = vsel %vm186, %v167, 0
  %v200 = vsel %vm186, %v168, 0
  %v203 = vsel %vm186, %v169, 0
  %v206 = vsel %vm186, %v170, 0
  %v209 = vsel %vm186, %v171, 0
  %211 = vmatpush.msra.mxu0 0.0
  %212 = vmatpush.msra.mxu0 0.0
  %213 = vmatpush.msra.mxu0 0.0
  %214 = vmatpush.msra.mxu0 0.0
  %215 = vmatpush.msra.mxu0 0.0
  %216 = vmatpush.msra.mxu0 0.0
  %217 = vmatpush.msra.mxu0 0.0
  %218 = vmatpush.msra.mxu0 0.0
  %219 = vmatpush.msra.mxu0 0.0
  %220 = vmatpush.msra.mxu0 0.0
  %221 = vmatpush.msra.mxu0 0.0
  %222 = vmatpush.msra.mxu0 0.0
  %223 = vmatpush.msra.mxu0 %v178
  %224 = vmatpush.msra.mxu0 %v176
  %225 = vmatpush.msra.mxu0 %v174
  %226 = vmatpush.msra.mxu0 %v172
  %227 = vmatmul.f32.gmra.mxu0 %v188
  %v228 = vpop.f32.mrf.mxu0
  %v229 = vadd.f32 %v182, %v228
  %230 = vmatmul.f32.gmra.mxu0 %v191
  %v231 = vpop.f32.mrf.mxu0
  %v232 = vadd.f32 %v182, %v231
  %233 = vmatmul.f32.gmra.mxu0 %v194
  %v234 = vpop.f32.mrf.mxu0
  %v235 = vadd.f32 %v182, %v234
  %236 = vmatmul.f32.gmra.mxu0 %v197
  %v237 = vpop.f32.mrf.mxu0
  %v238 = vadd.f32 %v182, %v237
  %239 = vmatmul.f32.gmra.mxu0 %v200
  %v240 = vpop.f32.mrf.mxu0
  %v241 = vadd.f32 %v182, %v240
  %242 = vmatmul.f32.gmra.mxu0 %v203
  %v243 = vpop.f32.mrf.mxu0
  %v244 = vadd.f32 %v182, %v243
  %245 = vmatmul.f32.gmra.mxu0 %v206
  %v246 = vpop.f32.mrf.mxu0
  %v247 = vadd.f32 %v182, %v246
  %248 = vmatmul.f32.gmra.mxu0 %v209
  %v249 = vpop.f32.mrf.mxu0
  %v250 = vadd.f32 %v182, %v249
  %251 = vdwg.mxu0
  %252 = vmatpush.msra.mxu0 0.0
  %253 = vmatpush.msra.mxu0 0.0
  %254 = vmatpush.msra.mxu0 0.0
  %255 = vmatpush.msra.mxu0 0.0
  %256 = vmatpush.msra.mxu0 0.0
  %257 = vmatpush.msra.mxu0 0.0
  %258 = vmatpush.msra.mxu0 0.0
  %259 = vmatpush.msra.mxu0 0.0
  %260 = vmatpush.msra.mxu0 0.0
  %261 = vmatpush.msra.mxu0 0.0
  %262 = vmatpush.msra.mxu0 0.0
  %263 = vmatpush.msra.mxu0 0.0
  %264 = vmatpush.msra.mxu0 %v179
  %265 = vmatpush.msra.mxu0 %v177
  %266 = vmatpush.msra.mxu0 %v175
  %267 = vmatpush.msra.mxu0 %v173
  %268 = vmatmul.f32.gmra.mxu0 %v188
  %v269 = vpop.f32.mrf.mxu0
  %v270 = vadd.f32 %v183, %v269
  %271 = vmatmul.f32.gmra.mxu0 %v191
  %v272 = vpop.f32.mrf.mxu0
  %v273 = vadd.f32 %v183, %v272
  %274 = vmatmul.f32.gmra.mxu0 %v194
  %v275 = vpop.f32.mrf.mxu0
  %v276 = vadd.f32 %v183, %v275
  %277 = vmatmul.f32.gmra.mxu0 %v197
  %v278 = vpop.f32.mrf.mxu0
  %v279 = vadd.f32 %v183, %v278
  %280 = vmatmul.f32.gmra.mxu0 %v200
  %v281 = vpop.f32.mrf.mxu0
  %v282 = vadd.f32 %v183, %v281
  %283 = vmatmul.f32.gmra.mxu0 %v203
  %v284 = vpop.f32.mrf.mxu0
  %v285 = vadd.f32 %v183, %v284
  %286 = vmatmul.f32.gmra.mxu0 %v206
  %v287 = vpop.f32.mrf.mxu0
  %v288 = vadd.f32 %v183, %v287
  %289 = vmatmul.f32.gmra.mxu0 %v209
  %v290 = vpop.f32.mrf.mxu0
  %v291 = vadd.f32 %v183, %v290
  %292 = vdwg.mxu0
  %293 = vst [vmem:[#allocation2] sm:$0xff] %v229
  %294 = vst [vmem:[#allocation2 + $0x8] sm:$0xff] %v270
  %295 = vst [vmem:[#allocation2 + $0x10] sm:$0xff] %v232
  %296 = vst [vmem:[#allocation2 + $0x18] sm:$0xff] %v273
  %297 = vst [vmem:[#allocation2 + $0x20] sm:$0xff] %v235
  %298 = vst [vmem:[#allocation2 + $0x28] sm:$0xff] %v276
  %299 = vst [vmem:[#allocation2 + $0x30] sm:$0xff] %v238
  %300 = vst [vmem:[#allocation2 + $0x38] sm:$0xff] %v279
  %301 = vst [vmem:[#allocation2 + $0x40] sm:$0xff] %v241
  %302 = vst [vmem:[#allocation2 + $0x48] sm:$0xff] %v282
  %303 = vst [vmem:[#allocation2 + $0x50] sm:$0xff] %v244
  %304 = vst [vmem:[#allocation2 + $0x58] sm:$0xff] %v285
  %305 = vst [vmem:[#allocation2 + $0x60] sm:$0xff] %v247
  %306 = vst [vmem:[#allocation2 + $0x68] sm:$0xff] %v288
  %307 = vst [vmem:[#allocation2 + $0x70] sm:$0xff] %v250
  %308 = vst [vmem:[#allocation2 + $0x78] sm:$0xff] %v291
  %v309 = vld [vmem:[%s4] sm:$0xff]
  %v310 = vld [vmem:[%s4 + $0x8] sm:$0xff]
  %v311 = vld [vmem:[%s4 + $0x10] sm:$0xff]
  %v312 = vld [vmem:[%s4 + $0x18] sm:$0xff]
  %v313 = vld [vmem:[%s5] sm:$0xff]
  %v314 = vld [vmem:[%s5 + $0x8] sm:$0xff]
  %v315 = vld [vmem:[%s5 + $0x10] sm:$0xff]
  %v316 = vld [vmem:[%s5 + $0x18] sm:$0xff]
  %v317 = vld [vmem:[#allocation2] sm:$0xff]
  %v318 = vld [vmem:[#allocation2 + $0x78] sm:$0xff]
  %v320 = vsel %vm186, 0.0, 0
  %322 = vmatpush.msra.mxu0 0.0
  %323 = vmatpush.msra.mxu0 0.0
  %324 = vmatpush.msra.mxu0 0.0
  %325 = vmatpush.msra.mxu0 0.0
  %326 = vmatpush.msra.mxu0 0.0
  %327 = vmatpush.msra.mxu0 0.0
  %328 = vmatpush.msra.mxu0 0.0
  %329 = vmatpush.msra.mxu0 0.0
  %330 = vmatpush.msra.mxu0 0.0
  %331 = vmatpush.msra.mxu0 0.0
  %332 = vmatpush.msra.mxu0 0.0
  %333 = vmatpush.msra.mxu0 0.0
  %334 = vmatpush.msra.mxu0 %v312
  %335 = vmatpush.msra.mxu0 %v311
  %336 = vmatpush.msra.mxu0 %v310
  %337 = vmatpush.msra.mxu0 %v309
  %338 = vmatmul.f32.gmra.mxu0 %v320
  %v339 = vpop.f32.mrf.mxu0
  %v340 = vadd.f32 0.0, %v339
  %341 = vdwg.mxu0
  %v342 = vadd.f32 %v317, %v340
  %v343 = vmul.f32 %v342, 0.5
  %v344 = vtanh.pop %v343
  %v345 = vadd.f32 %v344, 1.0
  %v346 = vmul.f32 %v345, 0.5
  %v347 = vtanh.pop %v342
  %v348 = vmul.f32 %v346, 0.0
  %350 = vrot.lane.b32.xlu0 %v347, 64
  %v351 = vpop.permute.xlu0 %350
  %v353 = vmul.f32 %v346, %v351
  %355 = vrot.lane.b32.xlu0 %v353, 32
  %v356 = vpop.permute.xlu0 %355
  %v358 = vadd.f32 %v348, %v356
  %v359 = vtanh.pop %v358
  %361 = vrot.lane.b32.xlu0 %v359, 64
  %v362 = vpop.permute.xlu0 %361
  %v364 = vmul.f32 %v346, %v362
  %365 = vmatpush.msra.mxu0 0.0
  %366 = vmatpush.msra.mxu0 0.0
  %367 = vmatpush.msra.mxu0 0.0
  %368 = vmatpush.msra.mxu0 0.0
  %369 = vmatpush.msra.mxu0 0.0
  %370 = vmatpush.msra.mxu0 0.0
  %371 = vmatpush.msra.mxu0 0.0
  %372 = vmatpush.msra.mxu0 0.0
  %373 = vmatpush.msra.mxu0 0.0
  %374 = vmatpush.msra.mxu0 0.0
  %375 = vmatpush.msra.mxu0 0.0
  %376 = vmatpush.msra.mxu0 0.0
  %377 = vmatpush.msra.mxu0 %v316
  %378 = vmatpush.msra.mxu0 %v315
  %379 = vmatpush.msra.mxu0 %v314
  %380 = vmatpush.msra.mxu0 %v313
  %381 = vmatmul.f32.gmra.mxu0 %v320
  %v382 = vpop.f32.mrf.mxu0
  %v383 = vadd.f32 0.0, %v382
  %384 = vdwg.mxu0
  %v385 = vadd.f32 %v318, %v383
  %v386 = vmul.f32 %v385, 0.5
  %v387 = vtanh.pop %v386
  %v388 = vadd.f32 %v387, 1.0
  %v389 = vmul.f32 %v388, 0.5
  %v390 = vtanh.pop %v385
  %v391 = vmul.f32 %v389, 0.0
  %393 = vrot.lane.b32.xlu0 %v390, 64
  %v394 = vpop.permute.xlu0 %393
  %v396 = vmul.f32 %v389, %v394
  %398 = vrot.lane.b32.xlu0 %v396, 32
  %v399 = vpop.permute.xlu0 %398
  %v401 = vadd.f32 %v391, %v399
  %v402 = vtanh.pop %v401
  %404 = vrot.lane.b32.xlu0 %v402, 64
  %v405 = vpop.permute.xlu0 %404
  %v407 = vmul.f32 %v389, %v405
  %409 = vrot.lane.b32.xlu0 %v364, 32
  %v410 = vpop.permute.xlu0 %409
  %412 = vst.msk [vmem:[#allocation3] sm:$0xff] %vm186, %v410
  %414 = vrot.lane.b32.xlu0 %v407, 32
  %v415 = vpop.permute.xlu0 %414
  %417 = vst.msk [vmem:[#allocation4 + $0x38] sm:$0xff] %vm186, %v415
  %v418 = vld [vmem:[#allocation2 + $0x10] sm:$0xff]
  %v419 = vld [vmem:[#allocation2 + $0x68] sm:$0xff]
  %v420 = vsel %vm186, %v410, 0
  %422 = vmatpush.msra.mxu0 0.0
  %423 = vmatpush.msra.mxu0 0.0
  %424 = vmatpush.msra.mxu0 0.0
  %425 = vmatpush.msra.mxu0 0.0
  %426 = vmatpush.msra.mxu0 0.0
  %427 = vmatpush.msra.mxu0 0.0
  %428 = vmatpush.msra.mxu0 0.0
  %429 = vmatpush.msra.mxu0 0.0
  %430 = vmatpush.msra.mxu0 0.0
  %431 = vmatpush.msra.mxu0 0.0
  %432 = vmatpush.msra.mxu0 0.0
  %433 = vmatpush.msra.mxu0 0.0
  %434 = vmatpush.msra.mxu0 %v312
  %435 = vmatpush.msra.mxu0 %v311
  %436 = vmatpush.msra.mxu0 %v310
  %437 = vmatpush.msra.mxu0 %v309
  %438 = vmatmul.f32.gmra.mxu0 %v420
  %v439 = vpop.f32.mrf.mxu0
  %v440 = vadd.f32 0.0, %v439
  %441 = vdwg.mxu0
  %v442 = vadd.f32 %v418, %v440
  %v443 = vmul.f32 %v442, 0.5
  %v444 = vtanh.pop %v443
  %v445 = vadd.f32 %v444, 1.0
  %v446 = vmul.f32 %v445, 0.5
  %v447 = vtanh.pop %v442
  %v448 = vmul.f32 %v446, %v358
  %450 = vrot.lane.b32.xlu0 %v447, 64
  %v451 = vpop.permute.xlu0 %450
  %v453 = vmul.f32 %v446, %v451
  %455 = vrot.lane.b32.xlu0 %v453, 32
  %v456 = vpop.permute.xlu0 %455
  %v458 = vadd.f32 %v448, %v456
  %v459 = vtanh.pop %v458
  %461 = vrot.lane.b32.xlu0 %v459, 64
  %v462 = vpop.permute.xlu0 %461
  %v464 = vmul.f32 %v446, %v462
  %v465 = vsel %vm186, %v415, 0
  %467 = vmatpush.msra.mxu0 0.0
  %468 = vmatpush.msra.mxu0 0.0
  %469 = vmatpush.msra.mxu0 0.0
  %470 = vmatpush.msra.mxu0 0.0
  %471 = vmatpush.msra.mxu0 0.0
  %472 = vmatpush.msra.mxu0 0.0
  %473 = vmatpush.msra.mxu0 0.0
  %474 = vmatpush.msra.mxu0 0.0
  %475 = vmatpush.msra.mxu0 0.0
  %476 = vmatpush.msra.mxu0 0.0
  %477 = vmatpush.msra.mxu0 0.0
  %478 = vmatpush.msra.mxu0 0.0
  %479 = vmatpush.msra.mxu0 %v316
  %480 = vmatpush.msra.mxu0 %v315
  %481 = vmatpush.msra.mxu0 %v314
  %482 = vmatpush.msra.mxu0 %v313
  %483 = vmatmul.f32.gmra.mxu0 %v465
  %v484 = vpop.f32.mrf.mxu0
  %v485 = vadd.f32 0.0, %v484
  %486 = vdwg.mxu0
  %v487 = vadd.f32 %v419, %v485
  %v488 = vmul.f32 %v487, 0.5
  %v489 = vtanh.pop %v488
  %v490 = vadd.f32 %v489, 1.0
  %v491 = vmul.f32 %v490, 0.5
  %v492 = vtanh.pop %v487
  %v493 = vmul.f32 %v491, %v401
  %495 = vrot.lane.b32.xlu0 %v492, 64
  %v496 = vpop.permute.xlu0 %495
  %v498 = vmul.f32 %v491, %v496
  %500 = vrot.lane.b32.xlu0 %v498, 32
  %v501 = vpop.permute.xlu0 %500
  %v503 = vadd.f32 %v493, %v501
  %v504 = vtanh.pop %v503
  %506 = vrot.lane.b32.xlu0 %v504, 64
  %v507 = vpop.permute.xlu0 %506
  %v509 = vmul.f32 %v491, %v507
  %511 = vrot.lane.b32.xlu0 %v464, 32
  %v512 = vpop.permute.xlu0 %511
  %514 = vst.msk [vmem:[#allocation3 + $0x8] sm:$0xff] %vm186, %v512
  %516 = vrot.lane.b32.xlu0 %v509, 32
  %v517 = vpop.permute.xlu0 %516
  %519 = vst.msk [vmem:[#allocation4 + $0x30] sm:$0xff] %vm186, %v517
  %v520 = vld [vmem:[#allocation2 + $0x20] sm:$0xff]
  %v521 = vld [vmem:[#allocation2 + $0x58] sm:$0xff]
  %v522 = vsel %vm186, %v512, 0
  %524 = vmatpush.msra.mxu0 0.0
  %525 = vmatpush.msra.mxu0 0.0
  %526 = vmatpush.msra.mxu0 0.0
  %527 = vmatpush.msra.mxu0 0.0
  %528 = vmatpush.msra.mxu0 0.0
  %529 = vmatpush.msra.mxu0 0.0
  %530 = vmatpush.msra.mxu0 0.0
  %531 = vmatpush.msra.mxu0 0.0
  %532 = vmatpush.msra.mxu0 0.0
  %533 = vmatpush.msra.mxu0 0.0
  %534 = vmatpush.msra.mxu0 0.0
  %535 = vmatpush.msra.mxu0 0.0
  %536 = vmatpush.msra.mxu0 %v312
  %537 = vmatpush.msra.mxu0 %v311
  %538 = vmatpush.msra.mxu0 %v310
  %539 = vmatpush.msra.mxu0 %v309
  %540 = vmatmul.f32.gmra.mxu0 %v522
  %v541 = vpop.f32.mrf.mxu0
  %v542 = vadd.f32 0.0, %v541
  %543 = vdwg.mxu0
  %v544 = vadd.f32 %v520, %v542
  %v545 = vmul.f32 %v544, 0.5
  %v546 = vtanh.pop %v545
  %v547 = vadd.f32 %v546, 1.0
  %v548 = vmul.f32 %v547, 0.5
  %v549 = vtanh.pop %v544
  %v550 = vmul.f32 %v548, %v458
  %552 = vrot.lane.b32.xlu0 %v549, 64
  %v553 = vpop.permute.xlu0 %552
  %v555 = vmul.f32 %v548, %v553
  %557 = vrot.lane.b32.xlu0 %v555, 32
  %v558 = vpop.permute.xlu0 %557
  %v560 = vadd.f32 %v550, %v558
  %v561 = vtanh.pop %v560
  %563 = vrot.lane.b32.xlu0 %v561, 64
  %v564 = vpop.permute.xlu0 %563
  %v566 = vmul.f32 %v548, %v564
  %v567 = vsel %vm186, %v517, 0
  %569 = vmatpush.msra.mxu0 0.0
  %570 = vmatpush.msra.mxu0 0.0
  %571 = vmatpush.msra.mxu0 0.0
  %572 = vmatpush.msra.mxu0 0.0
  %573 = vmatpush.msra.mxu0 0.0
  %574 = vmatpush.msra.mxu0 0.0
  %575 = vmatpush.msra.mxu0 0.0
  %576 = vmatpush.msra.mxu0 0.0
  %577 = vmatpush.msra.mxu0 0.0
  %578 = vmatpush.msra.mxu0 0.0
  %579 = vmatpush.msra.mxu0 0.0
  %580 = vmatpush.msra.mxu0 0.0
  %581 = vmatpush.msra.mxu0 %v316
  %582 = vmatpush.msra.mxu0 %v315
  %583 = vmatpush.msra.mxu0 %v314
  %584 = vmatpush.msra.mxu0 %v313
  %585 = vmatmul.f32.gmra.mxu0 %v567
  %v586 = vpop.f32.mrf.mxu0
  %v587 = vadd.f32 0.0, %v586
  %588 = vdwg.mxu0
  %v589 = vadd.f32 %v521, %v587
  %v590 = vmul.f32 %v589, 0.5
  %v591 = vtanh.pop %v590
  %v592 = vadd.f32 %v591, 1.0
  %v593 = vmul.f32 %v592, 0.5
  %v594 = vtanh.pop %v589
  %v595 = vmul.f32 %v593, %v503
  %597 = vrot.lane.b32.xlu0 %v594, 64
  %v598 = vpop.permute.xlu0 %597
  %v600 = vmul.f32 %v593, %v598
  %602 = vrot.lane.b32.xlu0 %v600, 32
  %v603 = vpop.permute.xlu0 %602
  %v605 = vadd.f32 %v595, %v603
  %v606 = vtanh.pop %v605
  %608 = vrot.lane.b32.xlu0 %v606, 64
  %v609 = vpop.permute.xlu0 %608
  %v611 = vmul.f32 %v593, %v609
  %613 = vrot.lane.b32.xlu0 %v566, 32
  %v614 = vpop.permute.xlu0 %613
  %616 = vst.msk [vmem:[#allocation3 + $0x10] sm:$0xff] %vm186, %v614
  %618 = vrot.lane.b32.xlu0 %v611, 32
  %v619 = vpop.permute.xlu0 %618
  %621 = vst.msk [vmem:[#allocation4 + $0x28] sm:$0xff] %vm186, %v619
  %v622 = vld [vmem:[#allocation2 + $0x30] sm:$0xff]
  %v623 = vld [vmem:[#allocation2 + $0x48] sm:$0xff]
  %v624 = vsel %vm186, %v614, 0
  %626 = vmatpush.msra.mxu0 0.0
  %627 = vmatpush.msra.mxu0 0.0
  %628 = vmatpush.msra.mxu0 0.0
  %629 = vmatpush.msra.mxu0 0.0
  %630 = vmatpush.msra.mxu0 0.0
  %631 = vmatpush.msra.mxu0 0.0
  %632 = vmatpush.msra.mxu0 0.0
  %633 = vmatpush.msra.mxu0 0.0
  %634 = vmatpush.msra.mxu0 0.0
  %635 = vmatpush.msra.mxu0 0.0
  %636 = vmatpush.msra.mxu0 0.0
  %637 = vmatpush.msra.mxu0 0.0
  %638 = vmatpush.msra.mxu0 %v312
  %639 = vmatpush.msra.mxu0 %v311
  %640 = vmatpush.msra.mxu0 %v310
  %641 = vmatpush.msra.mxu0 %v309
  %642 = vmatmul.f32.gmra.mxu0 %v624
  %v643 = vpop.f32.mrf.mxu0
  %v644 = vadd.f32 0.0, %v643
  %645 = vdwg.mxu0
  %v646 = vadd.f32 %v622, %v644
  %v647 = vmul.f32 %v646, 0.5
  %v648 = vtanh.pop %v647
  %v649 = vadd.f32 %v648, 1.0
  %v650 = vmul.f32 %v649, 0.5
  %v651 = vtanh.pop %v646
  %v652 = vmul.f32 %v650, %v560
  %654 = vrot.lane.b32.xlu0 %v651, 64
  %v655 = vpop.permute.xlu0 %654
  %v657 = vmul.f32 %v650, %v655
  %659 = vrot.lane.b32.xlu0 %v657, 32
  %v660 = vpop.permute.xlu0 %659
  %v662 = vadd.f32 %v652, %v660
  %v663 = vtanh.pop %v662
  %665 = vrot.lane.b32.xlu0 %v663, 64
  %v666 = vpop.permute.xlu0 %665
  %v668 = vmul.f32 %v650, %v666
  %v669 = vsel %vm186, %v619, 0
  %671 = vmatpush.msra.mxu0 0.0
  %672 = vmatpush.msra.mxu0 0.0
  %673 = vmatpush.msra.mxu0 0.0
  %674 = vmatpush.msra.mxu0 0.0
  %675 = vmatpush.msra.mxu0 0.0
  %676 = vmatpush.msra.mxu0 0.0
  %677 = vmatpush.msra.mxu0 0.0
  %678 = vmatpush.msra.mxu0 0.0
  %679 = vmatpush.msra.mxu0 0.0
  %680 = vmatpush.msra.mxu0 0.0
  %681 = vmatpush.msra.mxu0 0.0
  %682 = vmatpush.msra.mxu0 0.0
  %683 = vmatpush.msra.mxu0 %v316
  %684 = vmatpush.msra.mxu0 %v315
  %685 = vmatpush.msra.mxu0 %v314
  %686 = vmatpush.msra.mxu0 %v313
  %687 = vmatmul.f32.gmra.mxu0 %v669
  %v688 = vpop.f32.mrf.mxu0
  %v689 = vadd.f32 0.0, %v688
  %690 = vdwg.mxu0
  %v691 = vadd.f32 %v623, %v689
  %v692 = vmul.f32 %v691, 0.5
  %v693 = vtanh.pop %v692
  %v694 = vadd.f32 %v693, 1.0
  %v695 = vmul.f32 %v694, 0.5
  %v696 = vtanh.pop %v691
  %v697 = vmul.f32 %v695, %v605
  %699 = vrot.lane.b32.xlu0 %v696, 64
  %v700 = vpop.permute.xlu0 %699
  %v702 = vmul.f32 %v695, %v700
  %704 = vrot.lane.b32.xlu0 %v702, 32
  %v705 = vpop.permute.xlu0 %704
  %v707 = vadd.f32 %v697, %v705
  %v708 = vtanh.pop %v707
  %710 = vrot.lane.b32.xlu0 %v708, 64
  %v711 = vpop.permute.xlu0 %710
  %v713 = vmul.f32 %v695, %v711
  %715 = vrot.lane.b32.xlu0 %v668, 32
  %v716 = vpop.permute.xlu0 %715
  %718 = vst.msk [vmem:[#allocation3 + $0x18] sm:$0xff] %vm186, %v716
  %720 = vrot.lane.b32.xlu0 %v713, 32
  %v721 = vpop.permute.xlu0 %720
  %723 = vst.msk [vmem:[#allocation4 + $0x20] sm:$0xff] %vm186, %v721
  %v724 = vld [vmem:[#allocation2 + $0x40] sm:$0xff]
  %v725 = vld [vmem:[#allocation2 + $0x38] sm:$0xff]
  %v726 = vsel %vm186, %v716, 0
  %728 = vmatpush.msra.mxu0 0.0
  %729 = vmatpush.msra.mxu0 0.0
  %730 = vmatpush.msra.mxu0 0.0
  %731 = vmatpush.msra.mxu0 0.0
  %732 = vmatpush.msra.mxu0 0.0
  %733 = vmatpush.msra.mxu0 0.0
  %734 = vmatpush.msra.mxu0 0.0
  %735 = vmatpush.msra.mxu0 0.0
  %736 = vmatpush.msra.mxu0 0.0
  %737 = vmatpush.msra.mxu0 0.0
  %738 = vmatpush.msra.mxu0 0.0
  %739 = vmatpush.msra.mxu0 0.0
  %740 = vmatpush.msra.mxu0 %v312
  %741 = vmatpush.msra.mxu0 %v311
  %742 = vmatpush.msra.mxu0 %v310
  %743 = vmatpush.msra.mxu0 %v309
  %744 = vmatmul.f32.gmra.mxu0 %v726
  %v745 = vpop.f32.mrf.mxu0
  %v746 = vadd.f32 0.0, %v745
  %747 = vdwg.mxu0
  %v748 = vadd.f32 %v724, %v746
  %v749 = vmul.f32 %v748, 0.5
  %v750 = vtanh.pop %v749
  %v751 = vadd.f32 %v750, 1.0
  %v752 = vmul.f32 %v751, 0.5
  %v753 = vtanh.pop %v748
  %v754 = vmul.f32 %v752, %v662
  %756 = vrot.lane.b32.xlu0 %v753, 64
  %v757 = vpop.permute.xlu0 %756
  %v759 = vmul.f32 %v752, %v757
  %761 = vrot.lane.b32.xlu0 %v759, 32
  %v762 = vpop.permute.xlu0 %761
  %v764 = vadd.f32 %v754, %v762
  %v765 = vtanh.pop %v764
  %767 = vrot.lane.b32.xlu0 %v765, 64
  %v768 = vpop.permute.xlu0 %767
  %v770 = vmul.f32 %v752, %v768
  %v771 = vsel %vm186, %v721, 0
  %773 = vmatpush.msra.mxu0 0.0
  %774 = vmatpush.msra.mxu0 0.0
  %775 = vmatpush.msra.mxu0 0.0
  %776 = vmatpush.msra.mxu0 0.0
  %777 = vmatpush.msra.mxu0 0.0
  %778 = vmatpush.msra.mxu0 0.0
  %779 = vmatpush.msra.mxu0 0.0
  %780 = vmatpush.msra.mxu0 0.0
  %781 = vmatpush.msra.mxu0 0.0
  %782 = vmatpush.msra.mxu0 0.0
  %783 = vmatpush.msra.mxu0 0.0
  %784 = vmatpush.msra.mxu0 0.0
  %785 = vmatpush.msra.mxu0 %v316
  %786 = vmatpush.msra.mxu0 %v315
  %787 = vmatpush.msra.mxu0 %v314
  %788 = vmatpush.msra.mxu0 %v313
  %789 = vmatmul.f32.gmra.mxu0 %v771
  %v790 = vpop.f32.mrf.mxu0
  %v791 = vadd.f32 0.0, %v790
  %792 = vdwg.mxu0
  %v793 = vadd.f32 %v725, %v791
  %v794 = vmul.f32 %v793, 0.5
  %v795 = vtanh.pop %v794
  %v796 = vadd.f32 %v795, 1.0
  %v797 = vmul.f32 %v796, 0.5
  %v798 = vtanh.pop %v793
  %v799 = vmul.f32 %v797, %v707
  %801 = vrot.lane.b32.xlu0 %v798, 64
  %v802 = vpop.permute.xlu0 %801
  %v804 = vmul.f32 %v797, %v802
  %806 = vrot.lane.b32.xlu0 %v804, 32
  %v807 = vpop.permute.xlu0 %806
  %v809 = vadd.f32 %v799, %v807
  %v810 = vtanh.pop %v809
  %812 = vrot.lane.b32.xlu0 %v810, 64
  %v813 = vpop.permute.xlu0 %812
  %v815 = vmul.f32 %v797, %v813
  %817 = vrot.lane.b32.xlu0 %v770, 32
  %v818 = vpop.permute.xlu0 %817
  %820 = vst.msk [vmem:[#allocation3 + $0x20] sm:$0xff] %vm186, %v818
  %822 = vrot.lane.b32.xlu0 %v815, 32
  %v823 = vpop.permute.xlu0 %822
  %825 = vst.msk [vmem:[#allocation4 + $0x18] sm:$0xff] %vm186, %v823
  %v826 = vld [vmem:[#allocation2 + $0x50] sm:$0xff]
  %v827 = vld [vmem:[#allocation2 + $0x28] sm:$0xff]
  %v828 = vsel %vm186, %v818, 0
  %830 = vmatpush.msra.mxu0 0.0
  %831 = vmatpush.msra.mxu0 0.0
  %832 = vmatpush.msra.mxu0 0.0
  %833 = vmatpush.msra.mxu0 0.0
  %834 = vmatpush.msra.mxu0 0.0
  %835 = vmatpush.msra.mxu0 0.0
  %836 = vmatpush.msra.mxu0 0.0
  %837 = vmatpush.msra.mxu0 0.0
  %838 = vmatpush.msra.mxu0 0.0
  %839 = vmatpush.msra.mxu0 0.0
  %840 = vmatpush.msra.mxu0 0.0
  %841 = vmatpush.msra.mxu0 0.0
  %842 = vmatpush.msra.mxu0 %v312
  %843 = vmatpush.msra.mxu0 %v311
  %844 = vmatpush.msra.mxu0 %v310
  %845 = vmatpush.msra.mxu0 %v309
  %846 = vmatmul.f32.gmra.mxu0 %v828
  %v847 = vpop.f32.mrf.mxu0
  %v848 = vadd.f32 0.0, %v847
  %849 = vdwg.mxu0
  %v850 = vadd.f32 %v826, %v848
  %v851 = vmul.f32 %v850, 0.5
  %v852 = vtanh.pop %v851
  %v853 = vadd.f32 %v852, 1.0
  %v854 = vmul.f32 %v853, 0.5
  %v855 = vtanh.pop %v850
  %v856 = vmul.f32 %v854, %v764
  %858 = vrot.lane.b32.xlu0 %v855, 64
  %v859 = vpop.permute.xlu0 %858
  %v861 = vmul.f32 %v854, %v859
  %863 = vrot.lane.b32.xlu0 %v861, 32
  %v864 = vpop.permute.xlu0 %863
  %v866 = vadd.f32 %v856, %v864
  %v867 = vtanh.pop %v866
  %869 = vrot.lane.b32.xlu0 %v867, 64
  %v870 = vpop.permute.xlu0 %869
  %v872 = vmul.f32 %v854, %v870
  %v873 = vsel %vm186, %v823, 0
  %875 = vmatpush.msra.mxu0 0.0
  %876 = vmatpush.msra.mxu0 0.0
  %877 = vmatpush.msra.mxu0 0.0
  %878 = vmatpush.msra.mxu0 0.0
  %879 = vmatpush.msra.mxu0 0.0
  %880 = vmatpush.msra.mxu0 0.0
  %881 = vmatpush.msra.mxu0 0.0
  %882 = vmatpush.msra.mxu0 0.0
  %883 = vmatpush.msra.mxu0 0.0
  %884 = vmatpush.msra.mxu0 0.0
  %885 = vmatpush.msra.mxu0 0.0
  %886 = vmatpush.msra.mxu0 0.0
  %887 = vmatpush.msra.mxu0 %v316
  %888 = vmatpush.msra.mxu0 %v315
  %889 = vmatpush.msra.mxu0 %v314
  %890 = vmatpush.msra.mxu0 %v313
  %891 = vmatmul.f32.gmra.mxu0 %v873
  %v892 = vpop.f32.mrf.mxu0
  %v893 = vadd.f32 0.0, %v892
  %894 = vdwg.mxu0
  %v895 = vadd.f32 %v827, %v893
  %v896 = vmul.f32 %v895, 0.5
  %v897 = vtanh.pop %v896
  %v898 = vadd.f32 %v897, 1.0
  %v899 = vmul.f32 %v898, 0.5
  %v900 = vtanh.pop %v895
  %v901 = vmul.f32 %v899, %v809
  %903 = vrot.lane.b32.xlu0 %v900, 64
  %v904 = vpop.permute.xlu0 %903
  %v906 = vmul.f32 %v899, %v904
  %908 = vrot.lane.b32.xlu0 %v906, 32
  %v909 = vpop.permute.xlu0 %908
  %v911 = vadd.f32 %v901, %v909
  %v912 = vtanh.pop %v911
  %914 = vrot.lane.b32.xlu0 %v912, 64
  %v915 = vpop.permute.xlu0 %914
  %v917 = vmul.f32 %v899, %v915
  %919 = vrot.lane.b32.xlu0 %v872, 32
  %v920 = vpop.permute.xlu0 %919
  %922 = vst.msk [vmem:[#allocation3 + $0x28] sm:$0xff] %vm186, %v920
  %924 = vrot.lane.b32.xlu0 %v917, 32
  %v925 = vpop.permute.xlu0 %924
  %927 = vst.msk [vmem:[#allocation4 + $0x10] sm:$0xff] %vm186, %v925
  %v928 = vld [vmem:[#allocation2 + $0x60] sm:$0xff]
  %v929 = vld [vmem:[#allocation2 + $0x18] sm:$0xff]
  %v930 = vsel %vm186, %v920, 0
  %932 = vmatpush.msra.mxu0 0.0
  %933 = vmatpush.msra.mxu0 0.0
  %934 = vmatpush.msra.mxu0 0.0
  %935 = vmatpush.msra.mxu0 0.0
  %936 = vmatpush.msra.mxu0 0.0
  %937 = vmatpush.msra.mxu0 0.0
  %938 = vmatpush.msra.mxu0 0.0
  %939 = vmatpush.msra.mxu0 0.0
  %940 = vmatpush.msra.mxu0 0.0
  %941 = vmatpush.msra.mxu0 0.0
  %942 = vmatpush.msra.mxu0 0.0
  %943 = vmatpush.msra.mxu0 0.0
  %944 = vmatpush.msra.mxu0 %v312
  %945 = vmatpush.msra.mxu0 %v311
  %946 = vmatpush.msra.mxu0 %v310
  %947 = vmatpush.msra.mxu0 %v309
  %948 = vmatmul.f32.gmra.mxu0 %v930
  %v949 = vpop.f32.mrf.mxu0
  %v950 = vadd.f32 0.0, %v949
  %951 = vdwg.mxu0
  %v952 = vadd.f32 %v928, %v950
  %v953 = vmul.f32 %v952, 0.5
  %v954 = vtanh.pop %v953
  %v955 = vadd.f32 %v954, 1.0
  %v956 = vmul.f32 %v955, 0.5
  %v957 = vtanh.pop %v952
  %v958 = vmul.f32 %v956, %v866
  %960 = vrot.lane.b32.xlu0 %v957, 64
  %v961 = vpop.permute.xlu0 %960
  %v963 = vmul.f32 %v956, %v961
  %965 = vrot.lane.b32.xlu0 %v963, 32
  %v966 = vpop.permute.xlu0 %965
  %v968 = vadd.f32 %v958, %v966
  %v969 = vtanh.pop %v968
  %971 = vrot.lane.b32.xlu0 %v969, 64
  %v972 = vpop.permute.xlu0 %971
  %v974 = vmul.f32 %v956, %v972
  %v975 = vsel %vm186, %v925, 0
  %977 = vmatpush.msra.mxu0 0.0
  %978 = vmatpush.msra.mxu0 0.0
  %979 = vmatpush.msra.mxu0 0.0
  %980 = vmatpush.msra.mxu0 0.0
  %981 = vmatpush.msra.mxu0 0.0
  %982 = vmatpush.msra.mxu0 0.0
  %983 = vmatpush.msra.mxu0 0.0
  %984 = vmatpush.msra.mxu0 0.0
  %985 = vmatpush.msra.mxu0 0.0
  %986 = vmatpush.msra.mxu0 0.0
  %987 = vmatpush.msra.mxu0 0.0
  %988 = vmatpush.msra.mxu0 0.0
  %989 = vmatpush.msra.mxu0 %v316
  %990 = vmatpush.msra.mxu0 %v315
  %991 = vmatpush.msra.mxu0 %v314
  %992 = vmatpush.msra.mxu0 %v313
  %993 = vmatmul.f32.gmra.mxu0 %v975
  %v994 = vpop.f32.mrf.mxu0
  %v995 = vadd.f32 0.0, %v994
  %996 = vdwg.mxu0
  %v997 = vadd.f32 %v929, %v995
  %v998 = vmul.f32 %v997, 0.5
  %v999 = vtanh.pop %v998
  %v1000 = vadd.f32 %v999, 1.0
  %v1001 = vmul.f32 %v1000, 0.5
  %v1002 = vtanh.pop %v997
  %v1003 = vmul.f32 %v1001, %v911
  %1005 = vrot.lane.b32.xlu0 %v1002, 64
  %v1006 = vpop.permute.xlu0 %1005
  %v1008 = vmul.f32 %v1001, %v1006
  %1010 = vrot.lane.b32.xlu0 %v1008, 32
  %v1011 = vpop.permute.xlu0 %1010
  %v1013 = vadd.f32 %v1003, %v1011
  %v1014 = vtanh.pop %v1013
  %1016 = vrot.lane.b32.xlu0 %v1014, 64
  %v1017 = vpop.permute.xlu0 %1016
  %v1019 = vmul.f32 %v1001, %v1017
  %1021 = vrot.lane.b32.xlu0 %v974, 32
  %v1022 = vpop.permute.xlu0 %1021
  %1024 = vst.msk [vmem:[#allocation3 + $0x30] sm:$0xff] %vm186, %v1022
  %1026 = vrot.lane.b32.xlu0 %v1019, 32
  %v1027 = vpop.permute.xlu0 %1026
  %1029 = vst.msk [vmem:[#allocation4 + $0x8] sm:$0xff] %vm186, %v1027
  %v1030 = vld [vmem:[#allocation2 + $0x70] sm:$0xff]
  %v1031 = vld [vmem:[#allocation2 + $0x8] sm:$0xff]
  %v1032 = vsel %vm186, %v1022, 0
  %1034 = vmatpush.msra.mxu0 0.0
  %1035 = vmatpush.msra.mxu0 0.0
  %1036 = vmatpush.msra.mxu0 0.0
  %1037 = vmatpush.msra.mxu0 0.0
  %1038 = vmatpush.msra.mxu0 0.0
  %1039 = vmatpush.msra.mxu0 0.0
  %1040 = vmatpush.msra.mxu0 0.0
  %1041 = vmatpush.msra.mxu0 0.0
  %1042 = vmatpush.msra.mxu0 0.0
  %1043 = vmatpush.msra.mxu0 0.0
  %1044 = vmatpush.msra.mxu0 0.0
  %1045 = vmatpush.msra.mxu0 0.0
  %1046 = vmatpush.msra.mxu0 %v312
  %1047 = vmatpush.msra.mxu0 %v311
  %1048 = vmatpush.msra.mxu0 %v310
  %1049 = vmatpush.msra.mxu0 %v309
  %1050 = vmatmul.f32.gmra.mxu0 %v1032
  %v1051 = vpop.f32.mrf.mxu0
  %v1052 = vadd.f32 0.0, %v1051
  %1053 = vdwg.mxu0
  %v1054 = vadd.f32 %v1030, %v1052
  %v1055 = vmul.f32 %v1054, 0.5
  %v1056 = vtanh.pop %v1055
  %v1057 = vadd.f32 %v1056, 1.0
  %v1058 = vmul.f32 %v1057, 0.5
  %v1059 = vtanh.pop %v1054
  %v1060 = vmul.f32 %v1058, %v968
  %1062 = vrot.lane.b32.xlu0 %v1059, 64
  %v1063 = vpop.permute.xlu0 %1062
  %v1065 = vmul.f32 %v1058, %v1063
  %1067 = vrot.lane.b32.xlu0 %v1065, 32
  %v1068 = vpop.permute.xlu0 %1067
  %v1070 = vadd.f32 %v1060, %v1068
  %v1071 = vtanh.pop %v1070
  %1073 = vrot.lane.b32.xlu0 %v1071, 64
  %v1074 = vpop.permute.xlu0 %1073
  %v1076 = vmul.f32 %v1058, %v1074
  %v1077 = vsel %vm186, %v1027, 0
  %1079 = vmatpush.msra.mxu0 0.0
  %1080 = vmatpush.msra.mxu0 0.0
  %1081 = vmatpush.msra.mxu0 0.0
  %1082 = vmatpush.msra.mxu0 0.0
  %1083 = vmatpush.msra.mxu0 0.0
  %1084 = vmatpush.msra.mxu0 0.0
  %1085 = vmatpush.msra.mxu0 0.0
  %1086 = vmatpush.msra.mxu0 0.0
  %1087 = vmatpush.msra.mxu0 0.0
  %1088 = vmatpush.msra.mxu0 0.0
  %1089 = vmatpush.msra.mxu0 0.0
  %1090 = vmatpush.msra.mxu0 0.0
  %1091 = vmatpush.msra.mxu0 %v316
  %1092 = vmatpush.msra.mxu0 %v315
  %1093 = vmatpush.msra.mxu0 %v314
  %1094 = vmatpush.msra.mxu0 %v313
  %1095 = vmatmul.f32.gmra.mxu0 %v1077
  %v1096 = vpop.f32.mrf.mxu0
  %v1097 = vadd.f32 0.0, %v1096
  %1098 = vdwg.mxu0
  %v1099 = vadd.f32 %v1031, %v1097
  %v1100 = vmul.f32 %v1099, 0.5
  %v1101 = vtanh.pop %v1100
  %v1102 = vadd.f32 %v1101, 1.0
  %v1103 = vmul.f32 %v1102, 0.5
  %v1104 = vtanh.pop %v1099
  %v1105 = vmul.f32 %v1103, %v1013
  %1107 = vrot.lane.b32.xlu0 %v1104, 64
  %v1108 = vpop.permute.xlu0 %1107
  %v1110 = vmul.f32 %v1103, %v1108
  %1112 = vrot.lane.b32.xlu0 %v1110, 32
  %v1113 = vpop.permute.xlu0 %1112
  %v1115 = vadd.f32 %v1105, %v1113
  %v1116 = vtanh.pop %v1115
  %1118 = vrot.lane.b32.xlu0 %v1116, 64
  %v1119 = vpop.permute.xlu0 %1118
  %v1121 = vmul.f32 %v1103, %v1119
  %1123 = vrot.lane.b32.xlu0 %v1076, 32
  %v1124 = vpop.permute.xlu0 %1123
  %1126 = vst.msk [vmem:[#allocation3 + $0x38] sm:$0xff] %vm186, %v1124
  %1128 = vrot.lane.b32.xlu0 %v1121, 32
  %v1129 = vpop.permute.xlu0 %1128
  %1131 = vst.msk [vmem:[#allocation4] sm:$0xff] %vm186, %v1129
  %v1132 = vld [vmem:[#allocation3] sm:$0xff]
  %v1133 = vld [vmem:[#allocation3 + $0x8] sm:$0xff]
  %v1134 = vld [vmem:[#allocation3 + $0x10] sm:$0xff]
  %v1135 = vld [vmem:[#allocation3 + $0x18] sm:$0xff]
  %v1136 = vld [vmem:[#allocation3 + $0x20] sm:$0xff]
  %v1137 = vld [vmem:[#allocation3 + $0x28] sm:$0xff]
  %v1138 = vld [vmem:[#allocation3 + $0x30] sm:$0xff]
  %v1139 = vld [vmem:[#allocation3 + $0x38] sm:$0xff]
  %v1140 = vmax.f32 %v1132, 0.0
  %v1141 = vmax.f32 %v1133, 0.0
  %v1142 = vmax.f32 %v1134, 0.0
  %v1143 = vmax.f32 %v1135, 0.0
  %v1144 = vmax.f32 %v1136, 0.0
  %v1145 = vmax.f32 %v1137, 0.0
  %v1146 = vmax.f32 %v1138, 0.0
  %v1147 = vmax.f32 %v1139, 0.0
  %v1148 = vld [vmem:[#allocation4] sm:$0xff]
  %v1149 = vld [vmem:[#allocation4 + $0x8] sm:$0xff]
  %v1150 = vld [vmem:[#allocation4 + $0x10] sm:$0xff]
  %v1151 = vld [vmem:[#allocation4 + $0x18] sm:$0xff]
  %v1152 = vld [vmem:[#allocation4 + $0x20] sm:$0xff]
  %v1153 = vld [vmem:[#allocation4 + $0x28] sm:$0xff]
  %v1154 = vld [vmem:[#allocation4 + $0x30] sm:$0xff]
  %v1155 = vld [vmem:[#allocation4 + $0x38] sm:$0xff]
  %v1156 = vmax.f32 %v1148, 0.0
  %v1157 = vmax.f32 %v1149, 0.0
  %v1158 = vmax.f32 %v1150, 0.0
  %v1159 = vmax.f32 %v1151, 0.0
  %v1160 = vmax.f32 %v1152, 0.0
  %v1161 = vmax.f32 %v1153, 0.0
  %v1162 = vmax.f32 %v1154, 0.0
  %v1163 = vmax.f32 %v1155, 0.0
  %v1164 = vld [vmem:[%s6] sm:$0xff]
  %v1165 = vld [vmem:[%s6 + $0x8] sm:$0xff]
  %v1166 = vld [vmem:[%s6 + $0x10] sm:$0xff]
  %v1167 = vld [vmem:[%s6 + $0x18] sm:$0xff]
  %v1168 = vld [vmem:[%s6 + $0x20] sm:$0xff]
  %v1169 = vld [vmem:[%s6 + $0x28] sm:$0xff]
  %v1170 = vld [vmem:[%s6 + $0x30] sm:$0xff]
  %v1171 = vld [vmem:[%s6 + $0x38] sm:$0xff]
  %v1173 = vsel %vm186, %v1156, 0
  %v1176 = vsel %vm186, %v1157, 0
  %v1179 = vsel %vm186, %v1158, 0
  %v1182 = vsel %vm186, %v1159, 0
  %v1185 = vsel %vm186, %v1160, 0
  %v1188 = vsel %vm186, %v1161, 0
  %v1191 = vsel %vm186, %v1162, 0
  %v1194 = vsel %vm186, %v1163, 0
  %1196 = vmatpush.msra.mxu0 0.0
  %1197 = vmatpush.msra.mxu0 0.0
  %1198 = vmatpush.msra.mxu0 0.0
  %1199 = vmatpush.msra.mxu0 0.0
  %1200 = vmatpush.msra.mxu0 0.0
  %1201 = vmatpush.msra.mxu0 0.0
  %1202 = vmatpush.msra.mxu0 0.0
  %1203 = vmatpush.msra.mxu0 0.0
  %1204 = vmatpush.msra.mxu0 0.0
  %1205 = vmatpush.msra.mxu0 0.0
  %1206 = vmatpush.msra.mxu0 0.0
  %1207 = vmatpush.msra.mxu0 0.0
  %1208 = vmatpush.msra.mxu0 %v1171
  %1209 = vmatpush.msra.mxu0 %v1170
  %1210 = vmatpush.msra.mxu0 %v1169
  %1211 = vmatpush.msra.mxu0 %v1168
  %1212 = vmatmul.f32.gmra.mxu0 %v1173
  %v1213 = vpop.f32.mrf.mxu0
  %v1214 = vadd.f32 0.0, %v1213
  %1215 = vmatmul.f32.gmra.mxu0 %v1176
  %v1216 = vpop.f32.mrf.mxu0
  %v1217 = vadd.f32 0.0, %v1216
  %1218 = vmatmul.f32.gmra.mxu0 %v1179
  %v1219 = vpop.f32.mrf.mxu0
  %v1220 = vadd.f32 0.0, %v1219
  %1221 = vmatmul.f32.gmra.mxu0 %v1182
  %v1222 = vpop.f32.mrf.mxu0
  %v1223 = vadd.f32 0.0, %v1222
  %1224 = vmatmul.f32.gmra.mxu0 %v1185
  %v1225 = vpop.f32.mrf.mxu0
  %v1226 = vadd.f32 0.0, %v1225
  %1227 = vmatmul.f32.gmra.mxu0 %v1188
  %v1228 = vpop.f32.mrf.mxu0
  %v1229 = vadd.f32 0.0, %v1228
  %1230 = vmatmul.f32.gmra.mxu0 %v1191
  %v1231 = vpop.f32.mrf.mxu0
  %v1232 = vadd.f32 0.0, %v1231
  %1233 = vmatmul.f32.gmra.mxu0 %v1194
  %v1234 = vpop.f32.mrf.mxu0
  %v1235 = vadd.f32 0.0, %v1234
  %1236 = vdwg.mxu0
  %v1238 = vsel %vm186, %v1140, 0
  %v1241 = vsel %vm186, %v1141, 0
  %v1244 = vsel %vm186, %v1142, 0
  %v1247 = vsel %vm186, %v1143, 0
  %v1250 = vsel %vm186, %v1144, 0
  %v1253 = vsel %vm186, %v1145, 0
  %v1256 = vsel %vm186, %v1146, 0
  %v1259 = vsel %vm186, %v1147, 0
  %1261 = vmatpush.msra.mxu0 0.0
  %1262 = vmatpush.msra.mxu0 0.0
  %1263 = vmatpush.msra.mxu0 0.0
  %1264 = vmatpush.msra.mxu0 0.0
  %1265 = vmatpush.msra.mxu0 0.0
  %1266 = vmatpush.msra.mxu0 0.0
  %1267 = vmatpush.msra.mxu0 0.0
  %1268 = vmatpush.msra.mxu0 0.0
  %1269 = vmatpush.msra.mxu0 0.0
  %1270 = vmatpush.msra.mxu0 0.0
  %1271 = vmatpush.msra.mxu0 0.0
  %1272 = vmatpush.msra.mxu0 0.0
  %1273 = vmatpush.msra.mxu0 %v1167
  %1274 = vmatpush.msra.mxu0 %v1166
  %1275 = vmatpush.msra.mxu0 %v1165
  %1276 = vmatpush.msra.mxu0 %v1164
  %1277 = vmatmul.f32.gmra.mxu0 %v1238
  %v1278 = vpop.f32.mrf.mxu0
  %v1279 = vadd.f32 %v1214, %v1278
  %1280 = vmatmul.f32.gmra.mxu0 %v1241
  %v1281 = vpop.f32.mrf.mxu0
  %v1282 = vadd.f32 %v1217, %v1281
  %1283 = vmatmul.f32.gmra.mxu0 %v1244
  %v1284 = vpop.f32.mrf.mxu0
  %v1285 = vadd.f32 %v1220, %v1284
  %1286 = vmatmul.f32.gmra.mxu0 %v1247
  %v1287 = vpop.f32.mrf.mxu0
  %v1288 = vadd.f32 %v1223, %v1287
  %1289 = vmatmul.f32.gmra.mxu0 %v1250
  %v1290 = vpop.f32.mrf.mxu0
  %v1291 = vadd.f32 %v1226, %v1290
  %1292 = vmatmul.f32.gmra.mxu0 %v1253
  %v1293 = vpop.f32.mrf.mxu0
  %v1294 = vadd.f32 %v1229, %v1293
  %1295 = vmatmul.f32.gmra.mxu0 %v1256
  %v1296 = vpop.f32.mrf.mxu0
  %v1297 = vadd.f32 %v1232, %v1296
  %1298 = vmatmul.f32.gmra.mxu0 %v1259
  %v1299 = vpop.f32.mrf.mxu0
  %v1300 = vadd.f32 %v1235, %v1299
  %1301 = vdwg.mxu0
  %v1302 = vld [vmem:[%s7] sm:$0x1]
  %v1304 = vperm.slane %v1302, 0
  %v1306 = vadd.f32 %v1279, %v1304
  %v1307 = vadd.f32 %v1282, %v1304
  %v1308 = vadd.f32 %v1285, %v1304
  %v1309 = vadd.f32 %v1288, %v1304
  %v1310 = vadd.f32 %v1291, %v1304
  %v1311 = vadd.f32 %v1294, %v1304
  %v1312 = vadd.f32 %v1297, %v1304
  %v1313 = vadd.f32 %v1300, %v1304
  %1314 = vst [vmem:[%s8] sm:$0xff] %v1306
  %1315 = vst [vmem:[%s8 + $0x8] sm:$0xff] %v1307
  %1316 = vst [vmem:[%s8 + $0x10] sm:$0xff] %v1308
  %1317 = vst [vmem:[%s8 + $0x18] sm:$0xff] %v1309
  %1318 = vst [vmem:[%s8 + $0x20] sm:$0xff] %v1310
  %1319 = vst [vmem:[%s8 + $0x28] sm:$0xff] %v1311
  %1320 = vst [vmem:[%s8 + $0x30] sm:$0xff] %v1312
  %1321 = vst [vmem:[%s8 + $0x38] sm:$0xff] %v1313
  // Predicated region
  $region34: #{morph_lstm_forward.1} parent=0 // pred_check
    _
  $region35: #{morph_lstm_forward.1} parent=0 // pred_check_branch
    %1323 = sbr.rel (0) target = $region37
  $region36: #{morph_lstm_forward.1} parent=0 // pred_region
    _
  $region37: #{morph_lstm_forward.1} parent=0 // pred_fallthru
    _
  // Predicated region
  $region38: #{morph_lstm_forward.1} parent=0 // pred_check
    _
  $region39: #{morph_lstm_forward.1} parent=0 // pred_check_branch
    %1325 = sbr.rel (0) target = $region41
  $region40: #{morph_lstm_forward.1} parent=0 // pred_region
    _
  $region41: #{morph_lstm_forward.1} parent=0 // pred_fallthru
    _

</llo_original>
